<compile_context>
chip_gen: v5e
topology: v5e:2x2
jax: 0.10.0
libtpu: 0.0.40
codegen_flags: <defaults>
</compile_context>

<pallas_src>
import jax
import jax.numpy as jnp
from jax.experimental import pallas as pl
from jax.experimental.pallas import tpu as pltpu


def voxelize_kernel(x_ref, wl_ref, bl_ref, zemb_ref, ex_ref, ea_ref, out_ref):
    """One (batch, spatial-tile) block per grid step.

    x_ref   : (1, tn, C)    flattened spatial rows x channels (lanes = C)
    wl_ref  : (C, Z)        attention linear weight (pre-transposed)
    bl_ref  : (1, Z)        attention linear bias
    zemb_ref: (1, 1, C*Z)   per-batch z-embedding gate, flat c-major / z-minor
    ex_ref  : (C, C*Z)      0/1 expansion: ex[c, c'*Z + z] = (c == c')
    ea_ref  : (Z, C*Z)      0/1 expansion: ea[z, c*Z + z'] = (z == z')
    out_ref : (1, tn, C*Z)  lane-dense output block
    """
    x = x_ref[0].astype(jnp.float32)                               # (tn, C)

    # Per-pixel attention over Z (MXU matmul + EUP sigmoid), kept narrow (tn, Z).
    attn = jax.nn.sigmoid(
        jnp.dot(x, wl_ref[...], preferred_element_type=jnp.float32)
        + bl_ref[...])                                             # (tn, Z)

    # Lane-dense expansion on the otherwise-idle MXU:
    #   xe[n, c*Z+z] = x[n, c]      ;      ae[n, c*Z+z] = attn[n, z]
    xe = jnp.dot(x, ex_ref[...], preferred_element_type=jnp.float32)     # (tn, C*Z)
    ae = jnp.dot(attn, ea_ref[...], preferred_element_type=jnp.float32)  # (tn, C*Z)

    # out[n, c*Z+z] = x[n,c] * attn[n,z] * zemb[c*Z+z] — one full-width store.
    out_ref[0] = (xe * ae * zemb_ref[0]).astype(out_ref.dtype)


def _pick_spatial_tile(n, c, cz, out_elt_bytes, *, max_tile=1024,
                       blk_budget_bytes=24 << 20):
    """Largest multiple of 8 that divides n, is <= max_tile and whose
    double-buffered input+output blocks fit the VMEM block budget."""
    def blk_bytes(t):
        return 2 * t * c * 4 + 2 * t * cz * out_elt_bytes
    t = min(max_tile, n)
    t -= t % 8
    while t >= 8:
        if n % t == 0 and blk_bytes(t) <= blk_budget_bytes:
            return t
        t -= 8
    return n  # fall back to the full (un-tiled) spatial extent


def voxelize_forward(x_nchw, wl, bl, wz, bz, bev_z, *,
                     out_dtype=None, torch_layout=False, max_tile=1024):
    """x_nchw: (B, C, H, W); wl: (Z, C); bl: (Z,); wz: (C*Z, C); bz: (C*Z,).

    Returns (B, H, W, C, Z) by default (free reshape of the lane-dense kernel
    output).  torch_layout=True returns the exact PyTorch layout
    (B, C, H, W, Z) at the cost of one extra XLA transpose pass.
    """
    B, C, H, W = x_nchw.shape
    Z = bev_z
    N = H * W
    CZ = C * Z
    out_dtype = x_nchw.dtype if out_dtype is None else out_dtype

    # --- per-batch work (tiny) hoisted into plain XLA -------------------------
    x_nc = jnp.transpose(x_nchw, (0, 2, 3, 1)).reshape(B, N, C)        # (B, N, C)
    pooled = jnp.mean(x_nchw, axis=(2, 3))                             # (B, C)  AvgPool2d((H,W))
    zemb_flat = jax.nn.sigmoid(
        pooled.astype(jnp.float32) @ wz.T.astype(jnp.float32)
        + bz.astype(jnp.float32)).reshape(B, 1, CZ)                    # (B, 1, C*Z)

    wl_t = wl.T.astype(jnp.float32)                                    # (C, Z)
    bl2 = bl.reshape(1, Z).astype(jnp.float32)

    # Constant 0/1 lane-expansion matrices (fed to the MXU inside the kernel).
    lane_c = jnp.arange(CZ) // Z                                        # channel of each lane
    lane_z = jnp.arange(CZ) % Z                                         # z of each lane
    expand_x = (jnp.arange(C)[:, None] == lane_c[None, :]).astype(jnp.float32)   # (C, C*Z)
    expand_a = (jnp.arange(Z)[:, None] == lane_z[None, :]).astype(jnp.float32)   # (Z, C*Z)

    # --- tiling / VMEM budget -------------------------------------------------
    out_elt = jnp.dtype(out_dtype).itemsize
    tn = _pick_spatial_tile(N, C, CZ, out_elt, max_tile=max_tile)
    num_n = N // tn

    blk_bytes = 2 * tn * C * 4 + 2 * tn * CZ * out_elt                 # double-buffered blocks
    const_bytes = 2 * 4 * (C * Z + Z + CZ + C * CZ + Z * CZ)           # resident operands
    vmem_limit = int(min(48 * 2**20,
                         max(32 * 2**20, blk_bytes + const_bytes + (4 << 20))))

    out = pl.pallas_call(
        voxelize_kernel,
        out_shape=jax.ShapeDtypeStruct((B, N, CZ), out_dtype),
        grid_spec=pltpu.PrefetchScalarGridSpec(
            num_scalar_prefetch=0,
            grid=(B, num_n),
            in_specs=[
                pl.BlockSpec((1, tn, C), lambda b, n: (b, n, 0)),
                pl.BlockSpec((C, Z), lambda b, n: (0, 0)),
                pl.BlockSpec((1, Z), lambda b, n: (0, 0)),
                pl.BlockSpec((1, 1, CZ), lambda b, n: (b, 0, 0)),
                pl.BlockSpec((C, CZ), lambda b, n: (0, 0)),
                pl.BlockSpec((Z, CZ), lambda b, n: (0, 0)),
            ],
            out_specs=pl.BlockSpec((1, tn, CZ), lambda b, n: (b, n, 0)),
        ),
        compiler_params=pltpu.CompilerParams(
            dimension_semantics=("parallel", "parallel"),
            vmem_limit_bytes=vmem_limit),
    )(x_nc, wl_t, bl2, zemb_flat, expand_x, expand_a)

    # (B, N, C*Z) -> (B, H, W, C, Z) is a contiguous (free) reshape.
    out = out.reshape(B, H, W, C, Z)
    if torch_layout:
        # Exact PyTorch output layout (extra HBM pass over the large output).
        out = jnp.transpose(out, (0, 3, 1, 2, 4))
    return out


def voxelize_ref(x_nchw, wl, bl, wz, bz, Z):
    """Pure-JAX reference mirroring the PyTorch forward; output (B, C, H, W, Z)."""
    B, C, H, W = x_nchw.shape
    xp = jnp.transpose(x_nchw, (0, 2, 3, 1))                    # (B,H,W,C)
    attn = jax.nn.sigmoid(xp @ wl.T + bl)[:, None]              # (B,1,H,W,Z)
    pooled = jnp.mean(x_nchw, axis=(2, 3))                      # (B,C)   AvgPool2d + squeeze
    zemb = jax.nn.sigmoid(pooled @ wz.T + bz).reshape(B, C, Z)  # (B,C,Z)
    out = attn * x_nchw[..., None]                              # (B,C,H,W,Z)
    out = out * zemb[:, :, None, None, :]
    return out


if __name__ == "__main__":
    # Small self-consistent config: in_dim=32, bev_z_list[0]=8,
    # bev_h_list[0]=bev_w_list[0]=16 (so AvgPool2d((H,W)) is a full-spatial mean).
    B, C, H, W, Z = 2, 32, 16, 16, 8

    key = jax.random.PRNGKey(0)
    k1, k2, k3, k4, k5 = jax.random.split(key, 5)
    x = jax.random.normal(k1, (B, C, H, W), dtype=jnp.float32)
    # Deterministic synthetic parameters (shapes from nn.Linear in __init__).
    wl = 0.1 * jax.random.normal(k2, (Z, C), dtype=jnp.float32)       # linear.weight
    bl = 0.1 * jax.random.normal(k3, (Z,), dtype=jnp.float32)         # linear.bias
    wz = 0.1 * jax.random.normal(k4, (Z * C, C), dtype=jnp.float32)   # zembedding_linear.weight
    bz = 0.1 * jax.random.normal(k5, (Z * C,), dtype=jnp.float32)     # zembedding_linear.bias

    ref = voxelize_ref(x, wl, bl, wz, bz, Z)                          # (B,C,H,W,Z)

    # Lane-dense default layout (B, H, W, C, Z).
    out_dense = voxelize_forward(x, wl, bl, wz, bz, Z)
    out_dense = jax.block_until_ready(out_dense)
    assert out_dense.shape == (B, H, W, C, Z), out_dense.shape
    ref_dense = jnp.transpose(ref, (0, 2, 3, 1, 4))
    assert jnp.allclose(out_dense, ref_dense, rtol=1e-4, atol=1e-4), \
        float(jnp.max(jnp.abs(out_dense - ref_dense)))

    # Exact PyTorch layout for drop-in parity.
    out_torch = voxelize_forward(x, wl, bl, wz, bz, Z, torch_layout=True)
    out_torch = jax.block_until_ready(out_torch)
    assert out_torch.shape == (B, C, H, W, Z), out_torch.shape
    assert jnp.allclose(out_torch, ref, rtol=1e-4, atol=1e-4), \
        float(jnp.max(jnp.abs(out_torch - ref)))

    print("KERNEL_OK")
</pallas_src>

<mosaic_0001>
module attributes {stable_mosaic.version = 11 : i64} {
  func.func @voxelize_kernel(%arg0: i32, %arg1: i32, %arg2: memref<1x256x32xf32, #tpu.memory_space<vmem>>, %arg3: memref<32x8xf32, #tpu.memory_space<vmem>>, %arg4: memref<1x8xf32, #tpu.memory_space<vmem>>, %arg5: memref<1x1x256xf32, #tpu.memory_space<vmem>>, %arg6: memref<32x256xf32, #tpu.memory_space<vmem>>, %arg7: memref<8x256xf32, #tpu.memory_space<vmem>>, %arg8: memref<1x256x256xf32, #tpu.memory_space<vmem>>) attributes {dimension_semantics = [#tpu.dimension_semantics<parallel>, #tpu.dimension_semantics<parallel>], iteration_bounds = array<i64: 2, 1>, scalar_prefetch = 0 : i64, scratch_operands = 0 : i64, tpu.core_type = #tpu.core_type<tc>, window_params = [{transform_indices = @transform_0, window_bounds = array<i64: 1, 256, 32>}, {pipeline_mode = #tpu.pipeline_mode<synchronous>, transform_indices = @transform_1, window_bounds = array<i64: 32, 8>}, {pipeline_mode = #tpu.pipeline_mode<synchronous>, transform_indices = @transform_2, window_bounds = array<i64: 1, 8>}, {transform_indices = @transform_3, window_bounds = array<i64: 1, 1, 256>}, {pipeline_mode = #tpu.pipeline_mode<synchronous>, transform_indices = @transform_4, window_bounds = array<i64: 32, 256>}, {pipeline_mode = #tpu.pipeline_mode<synchronous>, transform_indices = @transform_5, window_bounds = array<i64: 8, 256>}, {transform_indices = @transform_6, window_bounds = array<i64: 1, 256, 256>}]} {
    %c0 = arith.constant 0 : index
    %c0_0 = arith.constant 0 : index
    %c0_1 = arith.constant 0 : index
    %0 = vector.load %arg2[%c0, %c0_0, %c0_1] : memref<1x256x32xf32, #tpu.memory_space<vmem>>, vector<1x256x32xf32>
    %1 = vector.shape_cast %0 : vector<1x256x32xf32> to vector<256x32xf32>
    %c0_2 = arith.constant 0 : index
    %c0_3 = arith.constant 0 : index
    %2 = vector.load %arg3[%c0_2, %c0_3] : memref<32x8xf32, #tpu.memory_space<vmem>>, vector<32x8xf32>
    %cst = arith.constant dense<0.000000e+00> : vector<256x8xf32>
    %3 = tpu.matmul %1, %2, %cst {dimension_numbers = #tpu.dot_dimension_numbers<[1], [0], [0], [1], [0, 0, 1, 1], [], []>} : vector<256x32xf32>, vector<32x8xf32>, vector<256x8xf32> -> vector<256x8xf32>
    %c0_4 = arith.constant 0 : index
    %c0_5 = arith.constant 0 : index
    %4 = vector.load %arg4[%c0_4, %c0_5] : memref<1x8xf32, #tpu.memory_space<vmem>>, vector<1x8xf32>
    %5 = vector.broadcast %4 : vector<1x8xf32> to vector<256x8xf32>
    %6 = arith.addf %3, %5 : vector<256x8xf32>
    %7 = arith.negf %6 : vector<256x8xf32>
    %8 = math.exp %7 : vector<256x8xf32>
    %cst_6 = arith.constant 1.000000e+00 : f32
    %9 = vector.broadcast %cst_6 : f32 to vector<256x8xf32>
    %10 = arith.addf %9, %8 : vector<256x8xf32>
    %11 = arith.divf %9, %10 : vector<256x8xf32>
    %c0_7 = arith.constant 0 : index
    %c0_8 = arith.constant 0 : index
    %12 = vector.load %arg6[%c0_7, %c0_8] : memref<32x256xf32, #tpu.memory_space<vmem>>, vector<32x256xf32>
    %cst_9 = arith.constant dense<0.000000e+00> : vector<256x256xf32>
    %13 = tpu.matmul %1, %12, %cst_9 {dimension_numbers = #tpu.dot_dimension_numbers<[1], [0], [0], [1], [0, 0, 1, 1], [], []>} : vector<256x32xf32>, vector<32x256xf32>, vector<256x256xf32> -> vector<256x256xf32>
    %c0_10 = arith.constant 0 : index
    %c0_11 = arith.constant 0 : index
    %14 = vector.load %arg7[%c0_10, %c0_11] : memref<8x256xf32, #tpu.memory_space<vmem>>, vector<8x256xf32>
    %cst_12 = arith.constant dense<0.000000e+00> : vector<256x256xf32>
    %15 = tpu.matmul %11, %14, %cst_12 {dimension_numbers = #tpu.dot_dimension_numbers<[1], [0], [0], [1], [0, 0, 1, 1], [], []>} : vector<256x8xf32>, vector<8x256xf32>, vector<256x256xf32> -> vector<256x256xf32>
    %16 = arith.mulf %13, %15 : vector<256x256xf32>
    %c0_13 = arith.constant 0 : index
    %c0_14 = arith.constant 0 : index
    %c0_15 = arith.constant 0 : index
    %17 = vector.load %arg5[%c0_13, %c0_14, %c0_15] : memref<1x1x256xf32, #tpu.memory_space<vmem>>, vector<1x1x256xf32>
    %18 = vector.shape_cast %17 : vector<1x1x256xf32> to vector<1x256xf32>
    %19 = vector.broadcast %18 : vector<1x256xf32> to vector<256x256xf32>
    %20 = arith.mulf %16, %19 : vector<256x256xf32>
    %c0_16 = arith.constant 0 : index
    %c0_17 = arith.constant 0 : index
    %c0_18 = arith.constant 0 : index
    %21 = vector.load %arg8[%c0_16, %c0_17, %c0_18] : memref<1x256x256xf32, #tpu.memory_space<vmem>>, vector<1x256x256xf32>
    %22 = vector.shape_cast %21 : vector<1x256x256xf32> to vector<256x256xf32>
    %23 = vector.shape_cast %20 : vector<256x256xf32> to vector<1x256x256xf32>
    tpu.vector_store %arg8[%c0_16, %c0_17, %c0_18], %23 {strides = array<i32>} : memref<1x256x256xf32, #tpu.memory_space<vmem>>, vector<1x256x256xf32>,
    return
  }
  func.func @transform_0(%arg0: i32, %arg1: i32) -> (i32, i32, i32) {
    %c0_i32 = arith.constant 0 : i32
    %c0_i32_0 = arith.constant 0 : i32
    return %arg0, %arg1, %c0_i32 : i32, i32, i32
  }
  func.func @transform_1(%arg0: i32, %arg1: i32) -> (i32, i32) {
    %c0_i32 = arith.constant 0 : i32
    %c0_i32_0 = arith.constant 0 : i32
    %c0_i32_1 = arith.constant 0 : i32
    return %c0_i32, %c0_i32_0 : i32, i32
  }
  func.func @transform_2(%arg0: i32, %arg1: i32) -> (i32, i32) {
    %c0_i32 = arith.constant 0 : i32
    %c0_i32_0 = arith.constant 0 : i32
    %c0_i32_1 = arith.constant 0 : i32
    return %c0_i32, %c0_i32_0 : i32, i32
  }
  func.func @transform_3(%arg0: i32, %arg1: i32) -> (i32, i32, i32) {
    %c0_i32 = arith.constant 0 : i32
    %c0_i32_0 = arith.constant 0 : i32
    %c0_i32_1 = arith.constant 0 : i32
    return %arg0, %c0_i32, %c0_i32_0 : i32, i32, i32
  }
  func.func @transform_4(%arg0: i32, %arg1: i32) -> (i32, i32) {
    %c0_i32 = arith.constant 0 : i32
    %c0_i32_0 = arith.constant 0 : i32
    %c0_i32_1 = arith.constant 0 : i32
    return %c0_i32, %c0_i32_0 : i32, i32
  }
  func.func @transform_5(%arg0: i32, %arg1: i32) -> (i32, i32) {
    %c0_i32 = arith.constant 0 : i32
    %c0_i32_0 = arith.constant 0 : i32
    %c0_i32_1 = arith.constant 0 : i32
    return %c0_i32, %c0_i32_0 : i32, i32
  }
  func.func @transform_6(%arg0: i32, %arg1: i32) -> (i32, i32, i32) {
    %c0_i32 = arith.constant 0 : i32
    %c0_i32_0 = arith.constant 0 : i32
    return %arg0, %arg1, %c0_i32 : i32, i32, i32
  }
}

</mosaic_0001>

<llo_original>
// kernel: tpu_custom_call.1
$region0: #{tpu_custom_call.1}
  #allocation0 [shape = 'u32[]', space=smem, size = 0x4, offset = 0x4, fixed_abs, tag = 'smem constant byte address 0x4 - core index']
  #allocation1 [shape = 'u32[72,128]{1,0:T(1,128)}', space=vmem, size = 0x9000, scoped, tag = 'internal scratch']
  %s0 = inlined_call_operand.vmem [shape: f32[2,256,32], index: 0, kind: input, shape index: {}]
  %s1 = inlined_call_operand.vmem [shape: f32[32,8], index: 1, kind: input, shape index: {}]
  %s2 = inlined_call_operand.vmem [shape: f32[1,8], index: 2, kind: input, shape index: {}]
  %s3 = inlined_call_operand.vmem [shape: f32[2,1,256], index: 3, kind: input, shape index: {}]
  %s4 = inlined_call_operand.vmem [shape: f32[32,256], index: 4, kind: input, shape index: {}]
  %s5 = inlined_call_operand.vmem [shape: f32[8,256], index: 5, kind: input, shape index: {}]
  %s6 = inlined_call_operand.hbm [shape: f32[2,256,256], index: 6, kind: output, shape index: {}]
  %s7 = sld [smem:[#allocation0]]
  $region57: #{tpu_custom_call.1} parent=0
    _
  %s9 = ssub.s32 1, %s7
  %s10 = scalar_select 0, %s9, %s7
  $region1: #{tpu_custom_call.1} parent=0
    #allocation2 [shape = 'u8[524288]{0}', space=vmem, size = 0x80000, scoped, tag = 'output window, operand 0']
    #allocation3 [shape = 's32[2]{0}', space=sflag, size = 0x8, scoped, tag = 'scoped memory for tpu_custom_call.1']
    %11 = vsyncpa [#allocation3], 0
    %s12 = scalar_lea.sflag [#allocation3], 1
    %13 = vsyncpa %s12, 0
    loop: start=0, step=1, limit=4
    $region2: #{tpu_custom_call.1} parent=1 // loop_pre_header
      _
    $region3: #{tpu_custom_call.1} parent=1 // loop_header
      %s15 = sphi 0, %s19
      %p16 = scmp.ge.s32.totalorder %s15, 4
      %s22 = sphi 0, %s34
      %s23 = sphi 0, %s30
      %s24 = sphi 0, %s22
      %s25 = sphi 0, %s23
      %s26 = sphi 0, %s24
      %s27 = sphi 0, %s25
      %s39 = sphi 0, %s41
      %s42 = sphi 0, %s39
      %s43 = sphi 0, %s42
      %s59 = sphi 0, %s43
      %s63 = sphi 0, %s63
      %s65 = sphi 0, %s63
      %s66 = sphi 0, %s65
      %s80 = sphi 0, %s66
      %s84 = sphi 0, %s84
      %s86 = sphi 0, %s84
      %s87 = sphi 0, %s86
      %s101 = sphi 0, %s87
      %s107 = sphi 0, %s109
      %s110 = sphi 0, %s107
      %s111 = sphi 0, %s110
      %s127 = sphi 0, %s111
      %s131 = sphi 0, %s131
      %s133 = sphi 0, %s131
      %s134 = sphi 0, %s133
      %s148 = sphi 0, %s134
      %s152 = sphi 0, %s152
      %s154 = sphi 0, %s152
      %s155 = sphi 0, %s154
      %s169 = sphi 0, %s155
      %s177 = sphi 0, %s179
      %s180 = sphi 0, %s177
      %s181 = sphi 0, %s180
      %s197 = sphi 0, %s181
    $region4: #{tpu_custom_call.1} parent=1 // loop_header_branch
      %18 = sbr.rel (%p16) target = $region8
    $region5: #{tpu_custom_call.1} parent=1 // loop_body
      %s20 = ssub.s32 %s15, 1
      %s21 = ssub.s32 %s15, 2
      %s28 = sadd.s32 1, %s23
      %p29 = scmp.ge.s32.totalorder %s28, 1
      %s30 = scalar_select %p29, 0, %s28
      %s31 = sadd.s32 1, %s22
      %s32 = scalar_select %p29, %s31, %s22
      %p33 = scmp.ge.s32.totalorder %s32, 2
      %s34 = scalar_select %p33, 0, %s32
      %s35 = ssub.s32 %s22, %s34
      %s36 = ssub.s32 %s23, %s30
      %s37 = sor.u32 %s35, %s36
      %p38 = scmp.eq.s32.totalorder %s37, 0
      %s40 = sadd.s32 %s39, 1
      %s41 = scalar_select %p38, %s39, %s40
      %p44 = pneg %p38
      %p45 = scmp.eq.s32.totalorder %s15, 1
      %p46 = por %p44, %p45
      %p47 = scmp.ne.s32.totalorder %s39, %s42
      %p48 = scmp.eq.s32.totalorder %s15, 0
      %p49 = por %p47, %p48
      %p50 = scmp.ne.s32.totalorder %s39, %s42
      %p51 = scmp.eq.s32.totalorder %s20, 1
      %p52 = por %p50, %p51
      %p53 = scmp.ne.s32.totalorder %s42, %s43
      %p54 = scmp.eq.s32.totalorder %s20, 0
      %p55 = por %p53, %p54
      %p56 = scmp.ne.s32.totalorder %s42, %s43
      %p57 = scmp.eq.s32.totalorder %s21, 1
      %p58 = por %p56, %p57
      %p60 = scmp.ne.s32.totalorder %s43, %s59
      %p61 = scmp.eq.s32.totalorder %s21, 0
      %p62 = por %p60, %p61
      %s64 = sadd.s32 %s63, 1
      %p67 = scmp.eq.s32.totalorder %s15, 1
      %p68 = scmp.ne.s32.totalorder %s63, %s65
      %p69 = scmp.eq.s32.totalorder %s15, 0
      %p70 = por %p68, %p69
      %p71 = scmp.ne.s32.totalorder %s63, %s65
      %p72 = scmp.eq.s32.totalorder %s20, 1
      %p73 = por %p71, %p72
      %p74 = scmp.ne.s32.totalorder %s65, %s66
      %p75 = scmp.eq.s32.totalorder %s20, 0
      %p76 = por %p74, %p75
      %p77 = scmp.ne.s32.totalorder %s65, %s66
      %p78 = scmp.eq.s32.totalorder %s21, 1
      %p79 = por %p77, %p78
      %p81 = scmp.ne.s32.totalorder %s66, %s80
      %p82 = scmp.eq.s32.totalorder %s21, 0
      %p83 = por %p81, %p82
      %s85 = sadd.s32 %s84, 1
      %p88 = scmp.eq.s32.totalorder %s15, 1
      %p89 = scmp.ne.s32.totalorder %s84, %s86
      %p90 = scmp.eq.s32.totalorder %s15, 0
      %p91 = por %p89, %p90
      %p92 = scmp.ne.s32.totalorder %s84, %s86
      %p93 = scmp.eq.s32.totalorder %s20, 1
      %p94 = por %p92, %p93
      %p95 = scmp.ne.s32.totalorder %s86, %s87
      %p96 = scmp.eq.s32.totalorder %s20, 0
      %p97 = por %p95, %p96
      %p98 = scmp.ne.s32.totalorder %s86, %s87
      %p99 = scmp.eq.s32.totalorder %s21, 1
      %p100 = por %p98, %p99
      %p102 = scmp.ne.s32.totalorder %s87, %s101
      %p103 = scmp.eq.s32.totalorder %s21, 0
      %p104 = por %p102, %p103
      %s105 = ssub.s32 %s22, %s34
      %p106 = scmp.eq.s32.totalorder %s105, 0
      %s108 = sadd.s32 %s107, 1
      %s109 = scalar_select %p106, %s107, %s108
      %p112 = pneg %p106
      %p113 = scmp.eq.s32.totalorder %s15, 1
      %p114 = por %p112, %p113
      %p115 = scmp.ne.s32.totalorder %s107, %s110
      %p116 = scmp.eq.s32.totalorder %s15, 0
      %p117 = por %p115, %p116
      %p118 = scmp.ne.s32.totalorder %s107, %s110
      %p119 = scmp.eq.s32.totalorder %s20, 1
      %p120 = por %p118, %p119
      %p121 = scmp.ne.s32.totalorder %s110, %s111
      %p122 = scmp.eq.s32.totalorder %s20, 0
      %p123 = por %p121, %p122
      %p124 = scmp.ne.s32.totalorder %s110, %s111
      %p125 = scmp.eq.s32.totalorder %s21, 1
      %p126 = por %p124, %p125
      %p128 = scmp.ne.s32.totalorder %s111, %s127
      %p129 = scmp.eq.s32.totalorder %s21, 0
      %p130 = por %p128, %p129
      %s132 = sadd.s32 %s131, 1
      %p135 = scmp.eq.s32.totalorder %s15, 1
      %p136 = scmp.ne.s32.totalorder %s131, %s133
      %p137 = scmp.eq.s32.totalorder %s15, 0
      %p138 = por %p136, %p137
      %p139 = scmp.ne.s32.totalorder %s131, %s133
      %p140 = scmp.eq.s32.totalorder %s20, 1
      %p141 = por %p139, %p140
      %p142 = scmp.ne.s32.totalorder %s133, %s134
      %p143 = scmp.eq.s32.totalorder %s20, 0
      %p144 = por %p142, %p143
      %p145 = scmp.ne.s32.totalorder %s133, %s134
      %p146 = scmp.eq.s32.totalorder %s21, 1
      %p147 = por %p145, %p146
      %p149 = scmp.ne.s32.totalorder %s134, %s148
      %p150 = scmp.eq.s32.totalorder %s21, 0
      %p151 = por %p149, %p150
      %s153 = sadd.s32 %s152, 1
      %p156 = scmp.eq.s32.totalorder %s15, 1
      %p157 = scmp.ne.s32.totalorder %s152, %s154
      %p158 = scmp.eq.s32.totalorder %s15, 0
      %p159 = por %p157, %p158
      %p160 = scmp.ne.s32.totalorder %s152, %s154
      %p161 = scmp.eq.s32.totalorder %s20, 1
      %p162 = por %p160, %p161
      %p163 = scmp.ne.s32.totalorder %s154, %s155
      %p164 = scmp.eq.s32.totalorder %s20, 0
      %p165 = por %p163, %p164
      %p166 = scmp.ne.s32.totalorder %s154, %s155
      %p167 = scmp.eq.s32.totalorder %s21, 1
      %p168 = por %p166, %p167
      %p170 = scmp.ne.s32.totalorder %s155, %s169
      %p171 = scmp.eq.s32.totalorder %s21, 0
      %p172 = por %p170, %p171
      %s173 = ssub.s32 %s22, %s34
      %s174 = ssub.s32 %s23, %s30
      %s175 = sor.u32 %s173, %s174
      %p176 = scmp.eq.s32.totalorder %s175, 0
      %s178 = sadd.s32 %s177, 1
      %s179 = scalar_select %p176, %s177, %s178
      %p182 = pneg %p176
      %p183 = scmp.eq.s32.totalorder %s15, 1
      %p184 = por %p182, %p183
      %p185 = scmp.ne.s32.totalorder %s177, %s180
      %p186 = scmp.eq.s32.totalorder %s15, 0
      %p187 = por %p185, %p186
      %p188 = scmp.ne.s32.totalorder %s177, %s180
      %p189 = scmp.eq.s32.totalorder %s20, 1
      %p190 = por %p188, %p189
      %p191 = scmp.ne.s32.totalorder %s180, %s181
      %p192 = scmp.eq.s32.totalorder %s20, 0
      %p193 = por %p191, %p192
      %p194 = scmp.ne.s32.totalorder %s180, %s181
      %p195 = scmp.eq.s32.totalorder %s21, 1
      %p196 = por %p194, %p195
      %p198 = scmp.ne.s32.totalorder %s181, %s197
      %p199 = scmp.eq.s32.totalorder %s21, 0
      %p200 = por %p198, %p199
      %p201 = scmp.le.s32.totalorder 1, %s15
      %p202 = scmp.lt.s32.totalorder %s15, 3
      %p203 = pnand %p201, %p202
      %p204 = pneg %p203
      // Predicated region
      $region9: #{tpu_custom_call.1} parent=5 // pred_check
        _
      $region10: #{tpu_custom_call.1} parent=5 // pred_check_branch
        %206 = sbr.rel (%p203) target = $region12
      $region11: #{tpu_custom_call.1} parent=5 // pred_region
        %s207 = ssub.s32 %s15, 1
        // Predicated region
        $region13: #{tpu_custom_call.1} parent=11 // pred_check
          %p208 = pneg %p76
        $region14: #{tpu_custom_call.1} parent=11 // pred_check_branch
          %210 = sbr.rel (%p208) target = $region16
        $region15: #{tpu_custom_call.1} parent=11 // pred_region
          _
        $region16: #{tpu_custom_call.1} parent=11 // pred_fallthru
          _
        // Predicated region
        $region17: #{tpu_custom_call.1} parent=11 // pred_check
          %p211 = pneg %p97
        $region18: #{tpu_custom_call.1} parent=11 // pred_check_branch
          %213 = sbr.rel (%p211) target = $region20
        $region19: #{tpu_custom_call.1} parent=11 // pred_region
          _
        $region20: #{tpu_custom_call.1} parent=11 // pred_fallthru
          _
        // Predicated region
        $region21: #{tpu_custom_call.1} parent=11 // pred_check
          %p214 = pneg %p144
        $region22: #{tpu_custom_call.1} parent=11 // pred_check_branch
          %216 = sbr.rel (%p214) target = $region24
        $region23: #{tpu_custom_call.1} parent=11 // pred_region
          _
        $region24: #{tpu_custom_call.1} parent=11 // pred_fallthru
          _
        // Predicated region
        $region25: #{tpu_custom_call.1} parent=11 // pred_check
          %p217 = pneg %p165
        $region26: #{tpu_custom_call.1} parent=11 // pred_check_branch
          %219 = sbr.rel (%p217) target = $region28
        $region27: #{tpu_custom_call.1} parent=11 // pred_region
          _
        $region28: #{tpu_custom_call.1} parent=11 // pred_fallthru
          _
      $region12: #{tpu_custom_call.1} parent=5 // pred_fallthru
        _
      %p220 = scmp.lt.s32.totalorder %s15, 2
      // Predicated region
      $region29: #{tpu_custom_call.1} parent=5 // pred_check
        %p221 = pneg %p220
      $region30: #{tpu_custom_call.1} parent=5 // pred_check_branch
        %223 = sbr.rel (%p221) target = $region32
      $region31: #{tpu_custom_call.1} parent=5 // pred_region
        // Predicated region
        $region33: #{tpu_custom_call.1} parent=31 // pred_check
          %p224 = pneg %p49
        $region34: #{tpu_custom_call.1} parent=31 // pred_check_branch
          %226 = sbr.rel (%p224) target = $region36
        $region35: #{tpu_custom_call.1} parent=31 // pred_region
          %s227 = smul.u32 32, %s23
          %p228 = scmp.lt.s32.totalorder %s22, 1
          %s229 = scalar_select %p228, %s22, 1
          %p230 = scmp.lt.s32.totalorder %s227, 31
          %s231 = scalar_select %p230, %s227, 31
          %s232 = smul.addr %s229, 32
          %s233 = sadd.s32 %s231, %s232
          %s234 = smul.addr %s233, 8
          %s235 = scalar_lea.vmem %s0, %s234
          %s236 = smul.u32 32, %s23
        $region36: #{tpu_custom_call.1} parent=31 // pred_fallthru
          _
        // Predicated region
        $region37: #{tpu_custom_call.1} parent=31 // pred_check
          %p237 = pneg %p117
        $region38: #{tpu_custom_call.1} parent=31 // pred_check_branch
          %239 = sbr.rel (%p237) target = $region40
        $region39: #{tpu_custom_call.1} parent=31 // pred_region
          %p240 = scmp.lt.s32.totalorder %s22, 1
          %s241 = scalar_select %p240, %s22, 1
          %s242 = smul.addr %s241, 2
          %s243 = scalar_lea.vmem %s3, %s242
        $region40: #{tpu_custom_call.1} parent=31 // pred_fallthru
          _
      $region32: #{tpu_custom_call.1} parent=5 // pred_fallthru
        _
      %p244 = scmp.le.s32.totalorder 1, %s15
      %p245 = scmp.lt.s32.totalorder %s15, 3
      %p246 = pnand %p244, %p245
      %p247 = pneg %p246
      // Predicated region
      $region41: #{tpu_custom_call.1} parent=5 // pred_check
        _
      $region42: #{tpu_custom_call.1} parent=5 // pred_check_branch
        %249 = sbr.rel (%p246) target = $region44
      $region43: #{tpu_custom_call.1} parent=5 // pred_region
        %s250 = ssub.s32 %s15, 1
        %s251 = smul.u32 32, %s25
        %p252 = scmp.lt.s32.totalorder %s24, 1
        %s253 = scalar_select %p252, %s24, 1
        %p254 = scmp.lt.s32.totalorder %s251, 31
        %s255 = scalar_select %p254, %s251, 31
        %s256 = smul.addr %s253, 32
        %s257 = sadd.s32 %s255, %s256
        %s258 = smul.addr %s257, 8
        %s259 = scalar_lea.vmem %s0, %s258
        %p260 = pneg %p55
        %p261 = pneg %p52
        %p262 = pneg %p76
        %p263 = pneg %p73
        %p264 = pneg %p97
        %p265 = pneg %p94
        %p266 = scmp.lt.s32.totalorder %s24, 1
        %s267 = scalar_select %p266, %s24, 1
        %s268 = smul.addr %s267, 2
        %s269 = scalar_lea.vmem %s3, %s268
        %p270 = pneg %p123
        %p271 = pneg %p120
        %p272 = pneg %p144
        %p273 = pneg %p141
        %p274 = pneg %p165
        %p275 = pneg %p162
        %p276 = pneg %p193
        %p277 = pneg %p190
        %s278 = sand.u32 %s180, 1
        %s279 = scalar_lea.sflag [#allocation3], %s278
        %s280 = sand.u32 %s180, 1
        %s281 = smul.addr %s280, 512
        %s282 = scalar_lea.vmem [#allocation2], %s281
        %s283 = smul.u32 32, %s25
        %p284 = scmp.lt.s32.totalorder %s24, 1
        %s285 = scalar_select %p284, %s24, 1
        %p286 = scmp.lt.s32.totalorder %s283, 31
        %s287 = scalar_select %p286, %s283, 31
        %s288 = smul.addr %s285, 32
        %s289 = sadd.s32 %s287, %s288
        %s290 = smul.addr %s289, 8
        %s291 = scalar_lea.vmem %s0, %s290
        %s292 = smul.u32 32, %s25
        %p293 = scmp.lt.s32.totalorder %s24, 1
        %s294 = scalar_select %p293, %s24, 1
        %s295 = smul.addr %s294, 2
        %s296 = scalar_lea.vmem %s3, %s295
        %s297 = smul.u32 32, %s25
        %v298 = vld [vmem:[%s291] sm:$0xff]
        %v299 = vld [vmem:[%s291 + $0x8] sm:$0xff]
        %v300 = vld [vmem:[%s291 + $0x10] sm:$0xff]
        %v301 = vld [vmem:[%s291 + $0x18] sm:$0xff]
        %v302 = vld [vmem:[%s291 + $0x20] sm:$0xff]
        %v303 = vld [vmem:[%s291 + $0x28] sm:$0xff]
        %v304 = vld [vmem:[%s291 + $0x30] sm:$0xff]
        %v305 = vld [vmem:[%s291 + $0x38] sm:$0xff]
        %v306 = vld [vmem:[%s291 + $0x40] sm:$0xff]
        %v307 = vld [vmem:[%s291 + $0x48] sm:$0xff]
        %v308 = vld [vmem:[%s291 + $0x50] sm:$0xff]
        %v309 = vld [vmem:[%s291 + $0x58] sm:$0xff]
        %v310 = vld [vmem:[%s291 + $0x60] sm:$0xff]
        %v311 = vld [vmem:[%s291 + $0x68] sm:$0xff]
        %v312 = vld [vmem:[%s291 + $0x70] sm:$0xff]
        %v313 = vld [vmem:[%s291 + $0x78] sm:$0xff]
        %v314 = vld [vmem:[%s291 + $0x80] sm:$0xff]
        %v315 = vld [vmem:[%s291 + $0x88] sm:$0xff]
        %v316 = vld [vmem:[%s291 + $0x90] sm:$0xff]
        %v317 = vld [vmem:[%s291 + $0x98] sm:$0xff]
        %v318 = vld [vmem:[%s291 + $0xa0] sm:$0xff]
        %v319 = vld [vmem:[%s291 + $0xa8] sm:$0xff]
        %v320 = vld [vmem:[%s291 + $0xb0] sm:$0xff]
        %v321 = vld [vmem:[%s291 + $0xb8] sm:$0xff]
        %v322 = vld [vmem:[%s291 + $0xc0] sm:$0xff]
        %v323 = vld [vmem:[%s291 + $0xc8] sm:$0xff]
        %v324 = vld [vmem:[%s291 + $0xd0] sm:$0xff]
        %v325 = vld [vmem:[%s291 + $0xd8] sm:$0xff]
        %v326 = vld [vmem:[%s291 + $0xe0] sm:$0xff]
        %v327 = vld [vmem:[%s291 + $0xe8] sm:$0xff]
        %v328 = vld [vmem:[%s291 + $0xf0] sm:$0xff]
        %v329 = vld [vmem:[%s291 + $0xf8] sm:$0xff]
        %v330 = vld [vmem:[%s1] sm:$0xff]
        %v331 = vld [vmem:[%s1 + $0x8] sm:$0xff]
        %v332 = vld [vmem:[%s1 + $0x10] sm:$0xff]
        %v333 = vld [vmem:[%s1 + $0x18] sm:$0xff]
        %v334 = vld [vmem:[%s2] sm:$0x1]
        %v336 = vperm.slane %v334, 0
        %vm338 = vcmask 261120
        %v340 = vsel %vm338, %v298, 0
        %v343 = vsel %vm338, %v299, 0
        %v346 = vsel %vm338, %v300, 0
        %v349 = vsel %vm338, %v301, 0
        %v352 = vsel %vm338, %v302, 0
        %v355 = vsel %vm338, %v303, 0
        %v358 = vsel %vm338, %v304, 0
        %v361 = vsel %vm338, %v305, 0
        %v364 = vsel %vm338, %v306, 0
        %v367 = vsel %vm338, %v307, 0
        %v370 = vsel %vm338, %v308, 0
        %v373 = vsel %vm338, %v309, 0
        %v376 = vsel %vm338, %v310, 0
        %v379 = vsel %vm338, %v311, 0
        %v382 = vsel %vm338, %v312, 0
        %v385 = vsel %vm338, %v313, 0
        %v388 = vsel %vm338, %v314, 0
        %v391 = vsel %vm338, %v315, 0
        %v394 = vsel %vm338, %v316, 0
        %v397 = vsel %vm338, %v317, 0
        %v400 = vsel %vm338, %v318, 0
        %v403 = vsel %vm338, %v319, 0
        %v406 = vsel %vm338, %v320, 0
        %v409 = vsel %vm338, %v321, 0
        %v412 = vsel %vm338, %v322, 0
        %v415 = vsel %vm338, %v323, 0
        %v418 = vsel %vm338, %v324, 0
        %v421 = vsel %vm338, %v325, 0
        %v424 = vsel %vm338, %v326, 0
        %v427 = vsel %vm338, %v327, 0
        %v430 = vsel %vm338, %v328, 0
        %v433 = vsel %vm338, %v329, 0
        %435 = vmatpush.msra.mxu0 0.0
        %436 = vmatpush.msra.mxu0 0.0
        %437 = vmatpush.msra.mxu0 0.0
        %438 = vmatpush.msra.mxu0 0.0
        %439 = vmatpush.msra.mxu0 0.0
        %440 = vmatpush.msra.mxu0 0.0
        %441 = vmatpush.msra.mxu0 0.0
        %442 = vmatpush.msra.mxu0 0.0
        %443 = vmatpush.msra.mxu0 0.0
        %444 = vmatpush.msra.mxu0 0.0
        %445 = vmatpush.msra.mxu0 0.0
        %446 = vmatpush.msra.mxu0 0.0
        %447 = vmatpush.msra.mxu0 %v333
        %448 = vmatpush.msra.mxu0 %v332
        %449 = vmatpush.msra.mxu0 %v331
        %450 = vmatpush.msra.mxu0 %v330
        %451 = vmatmul.f32.gmra.mxu0 %v340
        %v452 = vpop.f32.mrf.mxu0
        %v453 = vadd.f32 %v336, %v452
        %454 = vmatmul.f32.gmra.mxu0 %v343
        %v455 = vpop.f32.mrf.mxu0
        %v456 = vadd.f32 %v336, %v455
        %457 = vmatmul.f32.gmra.mxu0 %v346
        %v458 = vpop.f32.mrf.mxu0
        %v459 = vadd.f32 %v336, %v458
        %460 = vmatmul.f32.gmra.mxu0 %v349
        %v461 = vpop.f32.mrf.mxu0
        %v462 = vadd.f32 %v336, %v461
        %463 = vmatmul.f32.gmra.mxu0 %v352
        %v464 = vpop.f32.mrf.mxu0
        %v465 = vadd.f32 %v336, %v464
        %466 = vmatmul.f32.gmra.mxu0 %v355
        %v467 = vpop.f32.mrf.mxu0
        %v468 = vadd.f32 %v336, %v467
        %469 = vmatmul.f32.gmra.mxu0 %v358
        %v470 = vpop.f32.mrf.mxu0
        %v471 = vadd.f32 %v336, %v470
        %472 = vmatmul.f32.gmra.mxu0 %v361
        %v473 = vpop.f32.mrf.mxu0
        %v474 = vadd.f32 %v336, %v473
        %475 = vmatmul.f32.gmra.mxu0 %v364
        %v476 = vpop.f32.mrf.mxu0
        %v477 = vadd.f32 %v336, %v476
        %478 = vmatmul.f32.gmra.mxu0 %v367
        %v479 = vpop.f32.mrf.mxu0
        %v480 = vadd.f32 %v336, %v479
        %481 = vmatmul.f32.gmra.mxu0 %v370
        %v482 = vpop.f32.mrf.mxu0
        %v483 = vadd.f32 %v336, %v482
        %484 = vmatmul.f32.gmra.mxu0 %v373
        %v485 = vpop.f32.mrf.mxu0
        %v486 = vadd.f32 %v336, %v485
        %487 = vmatmul.f32.gmra.mxu0 %v376
        %v488 = vpop.f32.mrf.mxu0
        %v489 = vadd.f32 %v336, %v488
        %490 = vmatmul.f32.gmra.mxu0 %v379
        %v491 = vpop.f32.mrf.mxu0
        %v492 = vadd.f32 %v336, %v491
        %493 = vmatmul.f32.gmra.mxu0 %v382
        %v494 = vpop.f32.mrf.mxu0
        %v495 = vadd.f32 %v336, %v494
        %496 = vmatmul.f32.gmra.mxu0 %v385
        %v497 = vpop.f32.mrf.mxu0
        %v498 = vadd.f32 %v336, %v497
        %499 = vmatmul.f32.gmra.mxu0 %v388
        %v500 = vpop.f32.mrf.mxu0
        %v501 = vadd.f32 %v336, %v500
        %502 = vmatmul.f32.gmra.mxu0 %v391
        %v503 = vpop.f32.mrf.mxu0
        %v504 = vadd.f32 %v336, %v503
        %505 = vmatmul.f32.gmra.mxu0 %v394
        %v506 = vpop.f32.mrf.mxu0
        %v507 = vadd.f32 %v336, %v506
        %508 = vmatmul.f32.gmra.mxu0 %v397
        %v509 = vpop.f32.mrf.mxu0
        %v510 = vadd.f32 %v336, %v509
        %511 = vmatmul.f32.gmra.mxu0 %v400
        %v512 = vpop.f32.mrf.mxu0
        %v513 = vadd.f32 %v336, %v512
        %514 = vmatmul.f32.gmra.mxu0 %v403
        %v515 = vpop.f32.mrf.mxu0
        %v516 = vadd.f32 %v336, %v515
        %517 = vmatmul.f32.gmra.mxu0 %v406
        %v518 = vpop.f32.mrf.mxu0
        %v519 = vadd.f32 %v336, %v518
        %520 = vmatmul.f32.gmra.mxu0 %v409
        %v521 = vpop.f32.mrf.mxu0
        %v522 = vadd.f32 %v336, %v521
        %523 = vmatmul.f32.gmra.mxu0 %v412
        %v524 = vpop.f32.mrf.mxu0
        %v525 = vadd.f32 %v336, %v524
        %526 = vmatmul.f32.gmra.mxu0 %v415
        %v527 = vpop.f32.mrf.mxu0
        %v528 = vadd.f32 %v336, %v527
        %529 = vmatmul.f32.gmra.mxu0 %v418
        %v530 = vpop.f32.mrf.mxu0
        %v531 = vadd.f32 %v336, %v530
        %532 = vmatmul.f32.gmra.mxu0 %v421
        %v533 = vpop.f32.mrf.mxu0
        %v534 = vadd.f32 %v336, %v533
        %535 = vmatmul.f32.gmra.mxu0 %v424
        %v536 = vpop.f32.mrf.mxu0
        %v537 = vadd.f32 %v336, %v536
        %538 = vmatmul.f32.gmra.mxu0 %v427
        %v539 = vpop.f32.mrf.mxu0
        %v540 = vadd.f32 %v336, %v539
        %541 = vmatmul.f32.gmra.mxu0 %v430
        %v542 = vpop.f32.mrf.mxu0
        %v543 = vadd.f32 %v336, %v542
        %544 = vmatmul.f32.gmra.mxu0 %v433
        %v545 = vpop.f32.mrf.mxu0
        %v546 = vadd.f32 %v336, %v545
        %547 = vdwg.mxu0
        %v548 = vxor.u32 %v453, 2147483648
        %v549 = vxor.u32 %v456, 2147483648
        %v550 = vxor.u32 %v459, 2147483648
        %v551 = vxor.u32 %v462, 2147483648
        %v552 = vxor.u32 %v465, 2147483648
        %v553 = vxor.u32 %v468, 2147483648
        %v554 = vxor.u32 %v471, 2147483648
        %v555 = vxor.u32 %v474, 2147483648
        %v556 = vxor.u32 %v477, 2147483648
        %v557 = vxor.u32 %v480, 2147483648
        %v558 = vxor.u32 %v483, 2147483648
        %v559 = vxor.u32 %v486, 2147483648
        %v560 = vxor.u32 %v489, 2147483648
        %v561 = vxor.u32 %v492, 2147483648
        %v562 = vxor.u32 %v495, 2147483648
        %v563 = vxor.u32 %v498, 2147483648
        %v564 = vxor.u32 %v501, 2147483648
        %v565 = vxor.u32 %v504, 2147483648
        %v566 = vxor.u32 %v507, 2147483648
        %v567 = vxor.u32 %v510, 2147483648
        %v568 = vxor.u32 %v513, 2147483648
        %v569 = vxor.u32 %v516, 2147483648
        %v570 = vxor.u32 %v519, 2147483648
        %v571 = vxor.u32 %v522, 2147483648
        %v572 = vxor.u32 %v525, 2147483648
        %v573 = vxor.u32 %v528, 2147483648
        %v574 = vxor.u32 %v531, 2147483648
        %v575 = vxor.u32 %v534, 2147483648
        %v576 = vxor.u32 %v537, 2147483648
        %v577 = vxor.u32 %v540, 2147483648
        %v578 = vxor.u32 %v543, 2147483648
        %v579 = vxor.u32 %v546, 2147483648
        %v580 = vmul.f32 %v548, 1.442695
        %v581 = vpow.pop %v580
        %v582 = vmul.f32 %v549, 1.442695
        %v583 = vpow.pop %v582
        %v584 = vmul.f32 %v550, 1.442695
        %v585 = vpow.pop %v584
        %v586 = vmul.f32 %v551, 1.442695
        %v587 = vpow.pop %v586
        %v588 = vmul.f32 %v552, 1.442695
        %v589 = vpow.pop %v588
        %v590 = vmul.f32 %v553, 1.442695
        %v591 = vpow.pop %v590
        %v592 = vmul.f32 %v554, 1.442695
        %v593 = vpow.pop %v592
        %v594 = vmul.f32 %v555, 1.442695
        %v595 = vpow.pop %v594
        %v596 = vmul.f32 %v556, 1.442695
        %v597 = vpow.pop %v596
        %v598 = vmul.f32 %v557, 1.442695
        %v599 = vpow.pop %v598
        %v600 = vmul.f32 %v558, 1.442695
        %v601 = vpow.pop %v600
        %v602 = vmul.f32 %v559, 1.442695
        %v603 = vpow.pop %v602
        %v604 = vmul.f32 %v560, 1.442695
        %v605 = vpow.pop %v604
        %v606 = vmul.f32 %v561, 1.442695
        %v607 = vpow.pop %v606
        %v608 = vmul.f32 %v562, 1.442695
        %v609 = vpow.pop %v608
        %v610 = vmul.f32 %v563, 1.442695
        %v611 = vpow.pop %v610
        %v612 = vmul.f32 %v564, 1.442695
        %v613 = vpow.pop %v612
        %v614 = vmul.f32 %v565, 1.442695
        %v615 = vpow.pop %v614
        %v616 = vmul.f32 %v566, 1.442695
        %v617 = vpow.pop %v616
        %v618 = vmul.f32 %v567, 1.442695
        %v619 = vpow.pop %v618
        %v620 = vmul.f32 %v568, 1.442695
        %v621 = vpow.pop %v620
        %v622 = vmul.f32 %v569, 1.442695
        %v623 = vpow.pop %v622
        %v624 = vmul.f32 %v570, 1.442695
        %v625 = vpow.pop %v624
        %v626 = vmul.f32 %v571, 1.442695
        %v627 = vpow.pop %v626
        %v628 = vmul.f32 %v572, 1.442695
        %v629 = vpow.pop %v628
        %v630 = vmul.f32 %v573, 1.442695
        %v631 = vpow.pop %v630
        %v632 = vmul.f32 %v574, 1.442695
        %v633 = vpow.pop %v632
        %v634 = vmul.f32 %v575, 1.442695
        %v635 = vpow.pop %v634
        %v636 = vmul.f32 %v576, 1.442695
        %v637 = vpow.pop %v636
        %v638 = vmul.f32 %v577, 1.442695
        %v639 = vpow.pop %v638
        %v640 = vmul.f32 %v578, 1.442695
        %v641 = vpow.pop %v640
        %v642 = vmul.f32 %v579, 1.442695
        %v643 = vpow.pop %v642
        %v644 = vadd.f32 %v581, 1.0
        %v645 = vadd.f32 %v583, 1.0
        %v646 = vadd.f32 %v585, 1.0
        %v647 = vadd.f32 %v587, 1.0
        %v648 = vadd.f32 %v589, 1.0
        %v649 = vadd.f32 %v591, 1.0
        %v650 = vadd.f32 %v593, 1.0
        %v651 = vadd.f32 %v595, 1.0
        %v652 = vadd.f32 %v597, 1.0
        %v653 = vadd.f32 %v599, 1.0
        %v654 = vadd.f32 %v601, 1.0
        %v655 = vadd.f32 %v603, 1.0
        %v656 = vadd.f32 %v605, 1.0
        %v657 = vadd.f32 %v607, 1.0
        %v658 = vadd.f32 %v609, 1.0
        %v659 = vadd.f32 %v611, 1.0
        %v660 = vadd.f32 %v613, 1.0
        %v661 = vadd.f32 %v615, 1.0
        %v662 = vadd.f32 %v617, 1.0
        %v663 = vadd.f32 %v619, 1.0
        %v664 = vadd.f32 %v621, 1.0
        %v665 = vadd.f32 %v623, 1.0
        %v666 = vadd.f32 %v625, 1.0
        %v667 = vadd.f32 %v627, 1.0
        %v668 = vadd.f32 %v629, 1.0
        %v669 = vadd.f32 %v631, 1.0
        %v670 = vadd.f32 %v633, 1.0
        %v671 = vadd.f32 %v635, 1.0
        %v672 = vadd.f32 %v637, 1.0
        %v673 = vadd.f32 %v639, 1.0
        %v674 = vadd.f32 %v641, 1.0
        %v675 = vadd.f32 %v643, 1.0
        %v676 = vrcp.pop %v644
        %v677 = vmul.f32 %v644, %v676
        %v678 = vsub.f32 1.0, %v677
        %v679 = vmul.f32 %v676, %v678
        %v680 = vadd.f32 %v676, %v679
        %vm681 = vweird.f32 %v644
        %vm682 = vweird.f32 %v676
        %vm683 = vmor %vm681, %vm682
        %v684 = vsel %vm683, %v676, %v680
        %v685 = vand.u32 2147483647, %v644
        %vm686 = vcmp.eq.f32.partialorder %v685, 8.507059e+37
        %v687 = vand.u32 %v644, 2147483648
        %v688 = vor.u32 1.1754944e-38, %v687
        %v689 = vsel %vm686, %v688, %v684
        %v690 = vmul.f32 1.0, %v689
        %v691 = vrcp.pop %v645
        %v692 = vmul.f32 %v645, %v691
        %v693 = vsub.f32 1.0, %v692
        %v694 = vmul.f32 %v691, %v693
        %v695 = vadd.f32 %v691, %v694
        %vm696 = vweird.f32 %v645
        %vm697 = vweird.f32 %v691
        %vm698 = vmor %vm696, %vm697
        %v699 = vsel %vm698, %v691, %v695
        %v700 = vand.u32 2147483647, %v645
        %vm701 = vcmp.eq.f32.partialorder %v700, 8.507059e+37
        %v702 = vand.u32 %v645, 2147483648
        %v703 = vor.u32 1.1754944e-38, %v702
        %v704 = vsel %vm701, %v703, %v699
        %v705 = vmul.f32 1.0, %v704
        %v706 = vrcp.pop %v646
        %v707 = vmul.f32 %v646, %v706
        %v708 = vsub.f32 1.0, %v707
        %v709 = vmul.f32 %v706, %v708
        %v710 = vadd.f32 %v706, %v709
        %vm711 = vweird.f32 %v646
        %vm712 = vweird.f32 %v706
        %vm713 = vmor %vm711, %vm712
        %v714 = vsel %vm713, %v706, %v710
        %v715 = vand.u32 2147483647, %v646
        %vm716 = vcmp.eq.f32.partialorder %v715, 8.507059e+37
        %v717 = vand.u32 %v646, 2147483648
        %v718 = vor.u32 1.1754944e-38, %v717
        %v719 = vsel %vm716, %v718, %v714
        %v720 = vmul.f32 1.0, %v719
        %v721 = vrcp.pop %v647
        %v722 = vmul.f32 %v647, %v721
        %v723 = vsub.f32 1.0, %v722
        %v724 = vmul.f32 %v721, %v723
        %v725 = vadd.f32 %v721, %v724
        %vm726 = vweird.f32 %v647
        %vm727 = vweird.f32 %v721
        %vm728 = vmor %vm726, %vm727
        %v729 = vsel %vm728, %v721, %v725
        %v730 = vand.u32 2147483647, %v647
        %vm731 = vcmp.eq.f32.partialorder %v730, 8.507059e+37
        %v732 = vand.u32 %v647, 2147483648
        %v733 = vor.u32 1.1754944e-38, %v732
        %v734 = vsel %vm731, %v733, %v729
        %v735 = vmul.f32 1.0, %v734
        %v736 = vrcp.pop %v648
        %v737 = vmul.f32 %v648, %v736
        %v738 = vsub.f32 1.0, %v737
        %v739 = vmul.f32 %v736, %v738
        %v740 = vadd.f32 %v736, %v739
        %vm741 = vweird.f32 %v648
        %vm742 = vweird.f32 %v736
        %vm743 = vmor %vm741, %vm742
        %v744 = vsel %vm743, %v736, %v740
        %v745 = vand.u32 2147483647, %v648
        %vm746 = vcmp.eq.f32.partialorder %v745, 8.507059e+37
        %v747 = vand.u32 %v648, 2147483648
        %v748 = vor.u32 1.1754944e-38, %v747
        %v749 = vsel %vm746, %v748, %v744
        %v750 = vmul.f32 1.0, %v749
        %v751 = vrcp.pop %v649
        %v752 = vmul.f32 %v649, %v751
        %v753 = vsub.f32 1.0, %v752
        %v754 = vmul.f32 %v751, %v753
        %v755 = vadd.f32 %v751, %v754
        %vm756 = vweird.f32 %v649
        %vm757 = vweird.f32 %v751
        %vm758 = vmor %vm756, %vm757
        %v759 = vsel %vm758, %v751, %v755
        %v760 = vand.u32 2147483647, %v649
        %vm761 = vcmp.eq.f32.partialorder %v760, 8.507059e+37
        %v762 = vand.u32 %v649, 2147483648
        %v763 = vor.u32 1.1754944e-38, %v762
        %v764 = vsel %vm761, %v763, %v759
        %v765 = vmul.f32 1.0, %v764
        %v766 = vrcp.pop %v650
        %v767 = vmul.f32 %v650, %v766
        %v768 = vsub.f32 1.0, %v767
        %v769 = vmul.f32 %v766, %v768
        %v770 = vadd.f32 %v766, %v769
        %vm771 = vweird.f32 %v650
        %vm772 = vweird.f32 %v766
        %vm773 = vmor %vm771, %vm772
        %v774 = vsel %vm773, %v766, %v770
        %v775 = vand.u32 2147483647, %v650
        %vm776 = vcmp.eq.f32.partialorder %v775, 8.507059e+37
        %v777 = vand.u32 %v650, 2147483648
        %v778 = vor.u32 1.1754944e-38, %v777
        %v779 = vsel %vm776, %v778, %v774
        %v780 = vmul.f32 1.0, %v779
        %v781 = vrcp.pop %v651
        %v782 = vmul.f32 %v651, %v781
        %v783 = vsub.f32 1.0, %v782
        %v784 = vmul.f32 %v781, %v783
        %v785 = vadd.f32 %v781, %v784
        %vm786 = vweird.f32 %v651
        %vm787 = vweird.f32 %v781
        %vm788 = vmor %vm786, %vm787
        %v789 = vsel %vm788, %v781, %v785
        %v790 = vand.u32 2147483647, %v651
        %vm791 = vcmp.eq.f32.partialorder %v790, 8.507059e+37
        %v792 = vand.u32 %v651, 2147483648
        %v793 = vor.u32 1.1754944e-38, %v792
        %v794 = vsel %vm791, %v793, %v789
        %v795 = vmul.f32 1.0, %v794
        %v796 = vrcp.pop %v652
        %v797 = vmul.f32 %v652, %v796
        %v798 = vsub.f32 1.0, %v797
        %v799 = vmul.f32 %v796, %v798
        %v800 = vadd.f32 %v796, %v799
        %vm801 = vweird.f32 %v652
        %vm802 = vweird.f32 %v796
        %vm803 = vmor %vm801, %vm802
        %v804 = vsel %vm803, %v796, %v800
        %v805 = vand.u32 2147483647, %v652
        %vm806 = vcmp.eq.f32.partialorder %v805, 8.507059e+37
        %v807 = vand.u32 %v652, 2147483648
        %v808 = vor.u32 1.1754944e-38, %v807
        %v809 = vsel %vm806, %v808, %v804
        %v810 = vmul.f32 1.0, %v809
        %v811 = vrcp.pop %v653
        %v812 = vmul.f32 %v653, %v811
        %v813 = vsub.f32 1.0, %v812
        %v814 = vmul.f32 %v811, %v813
        %v815 = vadd.f32 %v811, %v814
        %vm816 = vweird.f32 %v653
        %vm817 = vweird.f32 %v811
        %vm818 = vmor %vm816, %vm817
        %v819 = vsel %vm818, %v811, %v815
        %v820 = vand.u32 2147483647, %v653
        %vm821 = vcmp.eq.f32.partialorder %v820, 8.507059e+37
        %v822 = vand.u32 %v653, 2147483648
        %v823 = vor.u32 1.1754944e-38, %v822
        %v824 = vsel %vm821, %v823, %v819
        %v825 = vmul.f32 1.0, %v824
        %v826 = vrcp.pop %v654
        %v827 = vmul.f32 %v654, %v826
        %v828 = vsub.f32 1.0, %v827
        %v829 = vmul.f32 %v826, %v828
        %v830 = vadd.f32 %v826, %v829
        %vm831 = vweird.f32 %v654
        %vm832 = vweird.f32 %v826
        %vm833 = vmor %vm831, %vm832
        %v834 = vsel %vm833, %v826, %v830
        %v835 = vand.u32 2147483647, %v654
        %vm836 = vcmp.eq.f32.partialorder %v835, 8.507059e+37
        %v837 = vand.u32 %v654, 2147483648
        %v838 = vor.u32 1.1754944e-38, %v837
        %v839 = vsel %vm836, %v838, %v834
        %v840 = vmul.f32 1.0, %v839
        %v841 = vrcp.pop %v655
        %v842 = vmul.f32 %v655, %v841
        %v843 = vsub.f32 1.0, %v842
        %v844 = vmul.f32 %v841, %v843
        %v845 = vadd.f32 %v841, %v844
        %vm846 = vweird.f32 %v655
        %vm847 = vweird.f32 %v841
        %vm848 = vmor %vm846, %vm847
        %v849 = vsel %vm848, %v841, %v845
        %v850 = vand.u32 2147483647, %v655
        %vm851 = vcmp.eq.f32.partialorder %v850, 8.507059e+37
        %v852 = vand.u32 %v655, 2147483648
        %v853 = vor.u32 1.1754944e-38, %v852
        %v854 = vsel %vm851, %v853, %v849
        %v855 = vmul.f32 1.0, %v854
        %v856 = vrcp.pop %v656
        %v857 = vmul.f32 %v656, %v856
        %v858 = vsub.f32 1.0, %v857
        %v859 = vmul.f32 %v856, %v858
        %v860 = vadd.f32 %v856, %v859
        %vm861 = vweird.f32 %v656
        %vm862 = vweird.f32 %v856
        %vm863 = vmor %vm861, %vm862
        %v864 = vsel %vm863, %v856, %v860
        %v865 = vand.u32 2147483647, %v656
        %vm866 = vcmp.eq.f32.partialorder %v865, 8.507059e+37
        %v867 = vand.u32 %v656, 2147483648
        %v868 = vor.u32 1.1754944e-38, %v867
        %v869 = vsel %vm866, %v868, %v864
        %v870 = vmul.f32 1.0, %v869
        %v871 = vrcp.pop %v657
        %v872 = vmul.f32 %v657, %v871
        %v873 = vsub.f32 1.0, %v872
        %v874 = vmul.f32 %v871, %v873
        %v875 = vadd.f32 %v871, %v874
        %vm876 = vweird.f32 %v657
        %vm877 = vweird.f32 %v871
        %vm878 = vmor %vm876, %vm877
        %v879 = vsel %vm878, %v871, %v875
        %v880 = vand.u32 2147483647, %v657
        %vm881 = vcmp.eq.f32.partialorder %v880, 8.507059e+37
        %v882 = vand.u32 %v657, 2147483648
        %v883 = vor.u32 1.1754944e-38, %v882
        %v884 = vsel %vm881, %v883, %v879
        %v885 = vmul.f32 1.0, %v884
        %v886 = vrcp.pop %v658
        %v887 = vmul.f32 %v658, %v886
        %v888 = vsub.f32 1.0, %v887
        %v889 = vmul.f32 %v886, %v888
        %v890 = vadd.f32 %v886, %v889
        %vm891 = vweird.f32 %v658
        %vm892 = vweird.f32 %v886
        %vm893 = vmor %vm891, %vm892
        %v894 = vsel %vm893, %v886, %v890
        %v895 = vand.u32 2147483647, %v658
        %vm896 = vcmp.eq.f32.partialorder %v895, 8.507059e+37
        %v897 = vand.u32 %v658, 2147483648
        %v898 = vor.u32 1.1754944e-38, %v897
        %v899 = vsel %vm896, %v898, %v894
        %v900 = vmul.f32 1.0, %v899
        %v901 = vrcp.pop %v659
        %v902 = vmul.f32 %v659, %v901
        %v903 = vsub.f32 1.0, %v902
        %v904 = vmul.f32 %v901, %v903
        %v905 = vadd.f32 %v901, %v904
        %vm906 = vweird.f32 %v659
        %vm907 = vweird.f32 %v901
        %vm908 = vmor %vm906, %vm907
        %v909 = vsel %vm908, %v901, %v905
        %v910 = vand.u32 2147483647, %v659
        %vm911 = vcmp.eq.f32.partialorder %v910, 8.507059e+37
        %v912 = vand.u32 %v659, 2147483648
        %v913 = vor.u32 1.1754944e-38, %v912
        %v914 = vsel %vm911, %v913, %v909
        %v915 = vmul.f32 1.0, %v914
        %v916 = vrcp.pop %v660
        %v917 = vmul.f32 %v660, %v916
        %v918 = vsub.f32 1.0, %v917
        %v919 = vmul.f32 %v916, %v918
        %v920 = vadd.f32 %v916, %v919
        %vm921 = vweird.f32 %v660
        %vm922 = vweird.f32 %v916
        %vm923 = vmor %vm921, %vm922
        %v924 = vsel %vm923, %v916, %v920
        %v925 = vand.u32 2147483647, %v660
        %vm926 = vcmp.eq.f32.partialorder %v925, 8.507059e+37
        %v927 = vand.u32 %v660, 2147483648
        %v928 = vor.u32 1.1754944e-38, %v927
        %v929 = vsel %vm926, %v928, %v924
        %v930 = vmul.f32 1.0, %v929
        %v931 = vrcp.pop %v661
        %v932 = vmul.f32 %v661, %v931
        %v933 = vsub.f32 1.0, %v932
        %v934 = vmul.f32 %v931, %v933
        %v935 = vadd.f32 %v931, %v934
        %vm936 = vweird.f32 %v661
        %vm937 = vweird.f32 %v931
        %vm938 = vmor %vm936, %vm937
        %v939 = vsel %vm938, %v931, %v935
        %v940 = vand.u32 2147483647, %v661
        %vm941 = vcmp.eq.f32.partialorder %v940, 8.507059e+37
        %v942 = vand.u32 %v661, 2147483648
        %v943 = vor.u32 1.1754944e-38, %v942
        %v944 = vsel %vm941, %v943, %v939
        %v945 = vmul.f32 1.0, %v944
        %v946 = vrcp.pop %v662
        %v947 = vmul.f32 %v662, %v946
        %v948 = vsub.f32 1.0, %v947
        %v949 = vmul.f32 %v946, %v948
        %v950 = vadd.f32 %v946, %v949
        %vm951 = vweird.f32 %v662
        %vm952 = vweird.f32 %v946
        %vm953 = vmor %vm951, %vm952
        %v954 = vsel %vm953, %v946, %v950
        %v955 = vand.u32 2147483647, %v662
        %vm956 = vcmp.eq.f32.partialorder %v955, 8.507059e+37
        %v957 = vand.u32 %v662, 2147483648
        %v958 = vor.u32 1.1754944e-38, %v957
        %v959 = vsel %vm956, %v958, %v954
        %v960 = vmul.f32 1.0, %v959
        %v961 = vrcp.pop %v663
        %v962 = vmul.f32 %v663, %v961
        %v963 = vsub.f32 1.0, %v962
        %v964 = vmul.f32 %v961, %v963
        %v965 = vadd.f32 %v961, %v964
        %vm966 = vweird.f32 %v663
        %vm967 = vweird.f32 %v961
        %vm968 = vmor %vm966, %vm967
        %v969 = vsel %vm968, %v961, %v965
        %v970 = vand.u32 2147483647, %v663
        %vm971 = vcmp.eq.f32.partialorder %v970, 8.507059e+37
        %v972 = vand.u32 %v663, 2147483648
        %v973 = vor.u32 1.1754944e-38, %v972
        %v974 = vsel %vm971, %v973, %v969
        %v975 = vmul.f32 1.0, %v974
        %v976 = vrcp.pop %v664
        %v977 = vmul.f32 %v664, %v976
        %v978 = vsub.f32 1.0, %v977
        %v979 = vmul.f32 %v976, %v978
        %v980 = vadd.f32 %v976, %v979
        %vm981 = vweird.f32 %v664
        %vm982 = vweird.f32 %v976
        %vm983 = vmor %vm981, %vm982
        %v984 = vsel %vm983, %v976, %v980
        %v985 = vand.u32 2147483647, %v664
        %vm986 = vcmp.eq.f32.partialorder %v985, 8.507059e+37
        %v987 = vand.u32 %v664, 2147483648
        %v988 = vor.u32 1.1754944e-38, %v987
        %v989 = vsel %vm986, %v988, %v984
        %v990 = vmul.f32 1.0, %v989
        %v991 = vrcp.pop %v665
        %v992 = vmul.f32 %v665, %v991
        %v993 = vsub.f32 1.0, %v992
        %v994 = vmul.f32 %v991, %v993
        %v995 = vadd.f32 %v991, %v994
        %vm996 = vweird.f32 %v665
        %vm997 = vweird.f32 %v991
        %vm998 = vmor %vm996, %vm997
        %v999 = vsel %vm998, %v991, %v995
        %v1000 = vand.u32 2147483647, %v665
        %vm1001 = vcmp.eq.f32.partialorder %v1000, 8.507059e+37
        %v1002 = vand.u32 %v665, 2147483648
        %v1003 = vor.u32 1.1754944e-38, %v1002
        %v1004 = vsel %vm1001, %v1003, %v999
        %v1005 = vmul.f32 1.0, %v1004
        %v1006 = vrcp.pop %v666
        %v1007 = vmul.f32 %v666, %v1006
        %v1008 = vsub.f32 1.0, %v1007
        %v1009 = vmul.f32 %v1006, %v1008
        %v1010 = vadd.f32 %v1006, %v1009
        %vm1011 = vweird.f32 %v666
        %vm1012 = vweird.f32 %v1006
        %vm1013 = vmor %vm1011, %vm1012
        %v1014 = vsel %vm1013, %v1006, %v1010
        %v1015 = vand.u32 2147483647, %v666
        %vm1016 = vcmp.eq.f32.partialorder %v1015, 8.507059e+37
        %v1017 = vand.u32 %v666, 2147483648
        %v1018 = vor.u32 1.1754944e-38, %v1017
        %v1019 = vsel %vm1016, %v1018, %v1014
        %v1020 = vmul.f32 1.0, %v1019
        %v1021 = vrcp.pop %v667
        %v1022 = vmul.f32 %v667, %v1021
        %v1023 = vsub.f32 1.0, %v1022
        %v1024 = vmul.f32 %v1021, %v1023
        %v1025 = vadd.f32 %v1021, %v1024
        %vm1026 = vweird.f32 %v667
        %vm1027 = vweird.f32 %v1021
        %vm1028 = vmor %vm1026, %vm1027
        %v1029 = vsel %vm1028, %v1021, %v1025
        %v1030 = vand.u32 2147483647, %v667
        %vm1031 = vcmp.eq.f32.partialorder %v1030, 8.507059e+37
        %v1032 = vand.u32 %v667, 2147483648
        %v1033 = vor.u32 1.1754944e-38, %v1032
        %v1034 = vsel %vm1031, %v1033, %v1029
        %v1035 = vmul.f32 1.0, %v1034
        %v1036 = vrcp.pop %v668
        %v1037 = vmul.f32 %v668, %v1036
        %v1038 = vsub.f32 1.0, %v1037
        %v1039 = vmul.f32 %v1036, %v1038
        %v1040 = vadd.f32 %v1036, %v1039
        %vm1041 = vweird.f32 %v668
        %vm1042 = vweird.f32 %v1036
        %vm1043 = vmor %vm1041, %vm1042
        %v1044 = vsel %vm1043, %v1036, %v1040
        %v1045 = vand.u32 2147483647, %v668
        %vm1046 = vcmp.eq.f32.partialorder %v1045, 8.507059e+37
        %v1047 = vand.u32 %v668, 2147483648
        %v1048 = vor.u32 1.1754944e-38, %v1047
        %v1049 = vsel %vm1046, %v1048, %v1044
        %v1050 = vmul.f32 1.0, %v1049
        %v1051 = vrcp.pop %v669
        %v1052 = vmul.f32 %v669, %v1051
        %v1053 = vsub.f32 1.0, %v1052
        %v1054 = vmul.f32 %v1051, %v1053
        %v1055 = vadd.f32 %v1051, %v1054
        %vm1056 = vweird.f32 %v669
        %vm1057 = vweird.f32 %v1051
        %vm1058 = vmor %vm1056, %vm1057
        %v1059 = vsel %vm1058, %v1051, %v1055
        %v1060 = vand.u32 2147483647, %v669
        %vm1061 = vcmp.eq.f32.partialorder %v1060, 8.507059e+37
        %v1062 = vand.u32 %v669, 2147483648
        %v1063 = vor.u32 1.1754944e-38, %v1062
        %v1064 = vsel %vm1061, %v1063, %v1059
        %v1065 = vmul.f32 1.0, %v1064
        %v1066 = vrcp.pop %v670
        %v1067 = vmul.f32 %v670, %v1066
        %v1068 = vsub.f32 1.0, %v1067
        %v1069 = vmul.f32 %v1066, %v1068
        %v1070 = vadd.f32 %v1066, %v1069
        %vm1071 = vweird.f32 %v670
        %vm1072 = vweird.f32 %v1066
        %vm1073 = vmor %vm1071, %vm1072
        %v1074 = vsel %vm1073, %v1066, %v1070
        %v1075 = vand.u32 2147483647, %v670
        %vm1076 = vcmp.eq.f32.partialorder %v1075, 8.507059e+37
        %v1077 = vand.u32 %v670, 2147483648
        %v1078 = vor.u32 1.1754944e-38, %v1077
        %v1079 = vsel %vm1076, %v1078, %v1074
        %v1080 = vmul.f32 1.0, %v1079
        %v1081 = vrcp.pop %v671
        %v1082 = vmul.f32 %v671, %v1081
        %v1083 = vsub.f32 1.0, %v1082
        %v1084 = vmul.f32 %v1081, %v1083
        %v1085 = vadd.f32 %v1081, %v1084
        %vm1086 = vweird.f32 %v671
        %vm1087 = vweird.f32 %v1081
        %vm1088 = vmor %vm1086, %vm1087
        %v1089 = vsel %vm1088, %v1081, %v1085
        %v1090 = vand.u32 2147483647, %v671
        %vm1091 = vcmp.eq.f32.partialorder %v1090, 8.507059e+37
        %v1092 = vand.u32 %v671, 2147483648
        %v1093 = vor.u32 1.1754944e-38, %v1092
        %v1094 = vsel %vm1091, %v1093, %v1089
        %v1095 = vmul.f32 1.0, %v1094
        %v1096 = vrcp.pop %v672
        %v1097 = vmul.f32 %v672, %v1096
        %v1098 = vsub.f32 1.0, %v1097
        %v1099 = vmul.f32 %v1096, %v1098
        %v1100 = vadd.f32 %v1096, %v1099
        %vm1101 = vweird.f32 %v672
        %vm1102 = vweird.f32 %v1096
        %vm1103 = vmor %vm1101, %vm1102
        %v1104 = vsel %vm1103, %v1096, %v1100
        %v1105 = vand.u32 2147483647, %v672
        %vm1106 = vcmp.eq.f32.partialorder %v1105, 8.507059e+37
        %v1107 = vand.u32 %v672, 2147483648
        %v1108 = vor.u32 1.1754944e-38, %v1107
        %v1109 = vsel %vm1106, %v1108, %v1104
        %v1110 = vmul.f32 1.0, %v1109
        %v1111 = vrcp.pop %v673
        %v1112 = vmul.f32 %v673, %v1111
        %v1113 = vsub.f32 1.0, %v1112
        %v1114 = vmul.f32 %v1111, %v1113
        %v1115 = vadd.f32 %v1111, %v1114
        %vm1116 = vweird.f32 %v673
        %vm1117 = vweird.f32 %v1111
        %vm1118 = vmor %vm1116, %vm1117
        %v1119 = vsel %vm1118, %v1111, %v1115
        %v1120 = vand.u32 2147483647, %v673
        %vm1121 = vcmp.eq.f32.partialorder %v1120, 8.507059e+37
        %v1122 = vand.u32 %v673, 2147483648
        %v1123 = vor.u32 1.1754944e-38, %v1122
        %v1124 = vsel %vm1121, %v1123, %v1119
        %v1125 = vmul.f32 1.0, %v1124
        %v1126 = vrcp.pop %v674
        %v1127 = vmul.f32 %v674, %v1126
        %v1128 = vsub.f32 1.0, %v1127
        %v1129 = vmul.f32 %v1126, %v1128
        %v1130 = vadd.f32 %v1126, %v1129
        %vm1131 = vweird.f32 %v674
        %vm1132 = vweird.f32 %v1126
        %vm1133 = vmor %vm1131, %vm1132
        %v1134 = vsel %vm1133, %v1126, %v1130
        %v1135 = vand.u32 2147483647, %v674
        %vm1136 = vcmp.eq.f32.partialorder %v1135, 8.507059e+37
        %v1137 = vand.u32 %v674, 2147483648
        %v1138 = vor.u32 1.1754944e-38, %v1137
        %v1139 = vsel %vm1136, %v1138, %v1134
        %v1140 = vmul.f32 1.0, %v1139
        %v1141 = vrcp.pop %v675
        %v1142 = vmul.f32 %v675, %v1141
        %v1143 = vsub.f32 1.0, %v1142
        %v1144 = vmul.f32 %v1141, %v1143
        %v1145 = vadd.f32 %v1141, %v1144
        %vm1146 = vweird.f32 %v675
        %vm1147 = vweird.f32 %v1141
        %vm1148 = vmor %vm1146, %vm1147
        %v1149 = vsel %vm1148, %v1141, %v1145
        %v1150 = vand.u32 2147483647, %v675
        %vm1151 = vcmp.eq.f32.partialorder %v1150, 8.507059e+37
        %v1152 = vand.u32 %v675, 2147483648
        %v1153 = vor.u32 1.1754944e-38, %v1152
        %v1154 = vsel %vm1151, %v1153, %v1149
        %v1155 = vmul.f32 1.0, %v1154
        %v1156 = vld [vmem:[%s4] sm:$0xff]
        %v1157 = vld [vmem:[%s4 + $0x8] sm:$0xff]
        %v1158 = vld [vmem:[%s4 + $0x10] sm:$0xff]
        %v1159 = vld [vmem:[%s4 + $0x18] sm:$0xff]
        %v1160 = vld [vmem:[%s4 + $0x20] sm:$0xff]
        %v1161 = vld [vmem:[%s4 + $0x28] sm:$0xff]
        %v1162 = vld [vmem:[%s4 + $0x30] sm:$0xff]
        %v1163 = vld [vmem:[%s4 + $0x38] sm:$0xff]
        %1164 = vmatpush.msra.mxu0 0.0
        %1165 = vmatpush.msra.mxu0 0.0
        %1166 = vmatpush.msra.mxu0 0.0
        %1167 = vmatpush.msra.mxu0 0.0
        %1168 = vmatpush.msra.mxu0 0.0
        %1169 = vmatpush.msra.mxu0 0.0
        %1170 = vmatpush.msra.mxu0 0.0
        %1171 = vmatpush.msra.mxu0 0.0
        %1172 = vmatpush.msra.mxu0 0.0
        %1173 = vmatpush.msra.mxu0 0.0
        %1174 = vmatpush.msra.mxu0 0.0
        %1175 = vmatpush.msra.mxu0 0.0
        %1176 = vmatpush.msra.mxu0 %v1162
        %1177 = vmatpush.msra.mxu0 %v1160
        %1178 = vmatpush.msra.mxu0 %v1158
        %1179 = vmatpush.msra.mxu0 %v1156
        %1180 = vmatmul.f32.gmra.mxu0 %v340
        %v1181 = vpop.f32.mrf.mxu0
        %v1182 = vadd.f32 0.0, %v1181
        %1183 = vmatmul.f32.gmra.mxu0 %v343
        %v1184 = vpop.f32.mrf.mxu0
        %v1185 = vadd.f32 0.0, %v1184
        %1186 = vmatmul.f32.gmra.mxu0 %v346
        %v1187 = vpop.f32.mrf.mxu0
        %v1188 = vadd.f32 0.0, %v1187
        %1189 = vmatmul.f32.gmra.mxu0 %v349
        %v1190 = vpop.f32.mrf.mxu0
        %v1191 = vadd.f32 0.0, %v1190
        %1192 = vmatmul.f32.gmra.mxu0 %v352
        %v1193 = vpop.f32.mrf.mxu0
        %v1194 = vadd.f32 0.0, %v1193
        %1195 = vmatmul.f32.gmra.mxu0 %v355
        %v1196 = vpop.f32.mrf.mxu0
        %v1197 = vadd.f32 0.0, %v1196
        %1198 = vmatmul.f32.gmra.mxu0 %v358
        %v1199 = vpop.f32.mrf.mxu0
        %v1200 = vadd.f32 0.0, %v1199
        %1201 = vmatmul.f32.gmra.mxu0 %v361
        %v1202 = vpop.f32.mrf.mxu0
        %v1203 = vadd.f32 0.0, %v1202
        %1204 = vmatmul.f32.gmra.mxu0 %v364
        %v1205 = vpop.f32.mrf.mxu0
        %v1206 = vadd.f32 0.0, %v1205
        %1207 = vmatmul.f32.gmra.mxu0 %v367
        %v1208 = vpop.f32.mrf.mxu0
        %v1209 = vadd.f32 0.0, %v1208
        %1210 = vmatmul.f32.gmra.mxu0 %v370
        %v1211 = vpop.f32.mrf.mxu0
        %v1212 = vadd.f32 0.0, %v1211
        %1213 = vmatmul.f32.gmra.mxu0 %v373
        %v1214 = vpop.f32.mrf.mxu0
        %v1215 = vadd.f32 0.0, %v1214
        %1216 = vmatmul.f32.gmra.mxu0 %v376
        %v1217 = vpop.f32.mrf.mxu0
        %v1218 = vadd.f32 0.0, %v1217
        %1219 = vmatmul.f32.gmra.mxu0 %v379
        %v1220 = vpop.f32.mrf.mxu0
        %v1221 = vadd.f32 0.0, %v1220
        %1222 = vmatmul.f32.gmra.mxu0 %v382
        %v1223 = vpop.f32.mrf.mxu0
        %v1224 = vadd.f32 0.0, %v1223
        %1225 = vmatmul.f32.gmra.mxu0 %v385
        %v1226 = vpop.f32.mrf.mxu0
        %v1227 = vadd.f32 0.0, %v1226
        %1228 = vmatmul.f32.gmra.mxu0 %v388
        %v1229 = vpop.f32.mrf.mxu0
        %v1230 = vadd.f32 0.0, %v1229
        %1231 = vmatmul.f32.gmra.mxu0 %v391
        %v1232 = vpop.f32.mrf.mxu0
        %v1233 = vadd.f32 0.0, %v1232
        %1234 = vmatmul.f32.gmra.mxu0 %v394
        %v1235 = vpop.f32.mrf.mxu0
        %v1236 = vadd.f32 0.0, %v1235
        %1237 = vmatmul.f32.gmra.mxu0 %v397
        %v1238 = vpop.f32.mrf.mxu0
        %v1239 = vadd.f32 0.0, %v1238
        %1240 = vmatmul.f32.gmra.mxu0 %v400
        %v1241 = vpop.f32.mrf.mxu0
        %v1242 = vadd.f32 0.0, %v1241
        %1243 = vmatmul.f32.gmra.mxu0 %v403
        %v1244 = vpop.f32.mrf.mxu0
        %v1245 = vadd.f32 0.0, %v1244
        %1246 = vmatmul.f32.gmra.mxu0 %v406
        %v1247 = vpop.f32.mrf.mxu0
        %v1248 = vadd.f32 0.0, %v1247
        %1249 = vmatmul.f32.gmra.mxu0 %v409
        %v1250 = vpop.f32.mrf.mxu0
        %v1251 = vadd.f32 0.0, %v1250
        %1252 = vmatmul.f32.gmra.mxu0 %v412
        %v1253 = vpop.f32.mrf.mxu0
        %v1254 = vadd.f32 0.0, %v1253
        %1255 = vmatmul.f32.gmra.mxu0 %v415
        %v1256 = vpop.f32.mrf.mxu0
        %v1257 = vadd.f32 0.0, %v1256
        %1258 = vmatmul.f32.gmra.mxu0 %v418
        %v1259 = vpop.f32.mrf.mxu0
        %v1260 = vadd.f32 0.0, %v1259
        %1261 = vmatmul.f32.gmra.mxu0 %v421
        %v1262 = vpop.f32.mrf.mxu0
        %v1263 = vadd.f32 0.0, %v1262
        %1264 = vmatmul.f32.gmra.mxu0 %v424
        %v1265 = vpop.f32.mrf.mxu0
        %v1266 = vadd.f32 0.0, %v1265
        %1267 = vmatmul.f32.gmra.mxu0 %v427
        %v1268 = vpop.f32.mrf.mxu0
        %v1269 = vadd.f32 0.0, %v1268
        %1270 = vmatmul.f32.gmra.mxu0 %v430
        %v1271 = vpop.f32.mrf.mxu0
        %v1272 = vadd.f32 0.0, %v1271
        %1273 = vmatmul.f32.gmra.mxu0 %v433
        %v1274 = vpop.f32.mrf.mxu0
        %v1275 = vadd.f32 0.0, %v1274
        %1276 = vdwg.mxu0
        %1277 = vmatpush.msra.mxu0 0.0
        %1278 = vmatpush.msra.mxu0 0.0
        %1279 = vmatpush.msra.mxu0 0.0
        %1280 = vmatpush.msra.mxu0 0.0
        %1281 = vmatpush.msra.mxu0 0.0
        %1282 = vmatpush.msra.mxu0 0.0
        %1283 = vmatpush.msra.mxu0 0.0
        %1284 = vmatpush.msra.mxu0 0.0
        %1285 = vmatpush.msra.mxu0 0.0
        %1286 = vmatpush.msra.mxu0 0.0
        %1287 = vmatpush.msra.mxu0 0.0
        %1288 = vmatpush.msra.mxu0 0.0
        %1289 = vmatpush.msra.mxu0 %v1163
        %1290 = vmatpush.msra.mxu0 %v1161
        %1291 = vmatpush.msra.mxu0 %v1159
        %1292 = vmatpush.msra.mxu0 %v1157
        %1293 = vmatmul.f32.gmra.mxu0 %v340
        %v1294 = vpop.f32.mrf.mxu0
        %v1295 = vadd.f32 0.0, %v1294
        %1296 = vmatmul.f32.gmra.mxu0 %v343
        %v1297 = vpop.f32.mrf.mxu0
        %v1298 = vadd.f32 0.0, %v1297
        %1299 = vmatmul.f32.gmra.mxu0 %v346
        %v1300 = vpop.f32.mrf.mxu0
        %v1301 = vadd.f32 0.0, %v1300
        %1302 = vmatmul.f32.gmra.mxu0 %v349
        %v1303 = vpop.f32.mrf.mxu0
        %v1304 = vadd.f32 0.0, %v1303
        %1305 = vmatmul.f32.gmra.mxu0 %v352
        %v1306 = vpop.f32.mrf.mxu0
        %v1307 = vadd.f32 0.0, %v1306
        %1308 = vmatmul.f32.gmra.mxu0 %v355
        %v1309 = vpop.f32.mrf.mxu0
        %v1310 = vadd.f32 0.0, %v1309
        %1311 = vmatmul.f32.gmra.mxu0 %v358
        %v1312 = vpop.f32.mrf.mxu0
        %v1313 = vadd.f32 0.0, %v1312
        %1314 = vmatmul.f32.gmra.mxu0 %v361
        %v1315 = vpop.f32.mrf.mxu0
        %v1316 = vadd.f32 0.0, %v1315
        %1317 = vmatmul.f32.gmra.mxu0 %v364
        %v1318 = vpop.f32.mrf.mxu0
        %v1319 = vadd.f32 0.0, %v1318
        %1320 = vmatmul.f32.gmra.mxu0 %v367
        %v1321 = vpop.f32.mrf.mxu0
        %v1322 = vadd.f32 0.0, %v1321
        %1323 = vmatmul.f32.gmra.mxu0 %v370
        %v1324 = vpop.f32.mrf.mxu0
        %v1325 = vadd.f32 0.0, %v1324
        %1326 = vmatmul.f32.gmra.mxu0 %v373
        %v1327 = vpop.f32.mrf.mxu0
        %v1328 = vadd.f32 0.0, %v1327
        %1329 = vmatmul.f32.gmra.mxu0 %v376
        %v1330 = vpop.f32.mrf.mxu0
        %v1331 = vadd.f32 0.0, %v1330
        %1332 = vmatmul.f32.gmra.mxu0 %v379
        %v1333 = vpop.f32.mrf.mxu0
        %v1334 = vadd.f32 0.0, %v1333
        %1335 = vmatmul.f32.gmra.mxu0 %v382
        %v1336 = vpop.f32.mrf.mxu0
        %v1337 = vadd.f32 0.0, %v1336
        %1338 = vmatmul.f32.gmra.mxu0 %v385
        %v1339 = vpop.f32.mrf.mxu0
        %v1340 = vadd.f32 0.0, %v1339
        %1341 = vmatmul.f32.gmra.mxu0 %v388
        %v1342 = vpop.f32.mrf.mxu0
        %v1343 = vadd.f32 0.0, %v1342
        %1344 = vmatmul.f32.gmra.mxu0 %v391
        %v1345 = vpop.f32.mrf.mxu0
        %v1346 = vadd.f32 0.0, %v1345
        %1347 = vmatmul.f32.gmra.mxu0 %v394
        %v1348 = vpop.f32.mrf.mxu0
        %v1349 = vadd.f32 0.0, %v1348
        %1350 = vmatmul.f32.gmra.mxu0 %v397
        %v1351 = vpop.f32.mrf.mxu0
        %v1352 = vadd.f32 0.0, %v1351
        %1353 = vmatmul.f32.gmra.mxu0 %v400
        %v1354 = vpop.f32.mrf.mxu0
        %v1355 = vadd.f32 0.0, %v1354
        %1356 = vmatmul.f32.gmra.mxu0 %v403
        %v1357 = vpop.f32.mrf.mxu0
        %v1358 = vadd.f32 0.0, %v1357
        %1359 = vmatmul.f32.gmra.mxu0 %v406
        %v1360 = vpop.f32.mrf.mxu0
        %v1361 = vadd.f32 0.0, %v1360
        %1362 = vmatmul.f32.gmra.mxu0 %v409
        %v1363 = vpop.f32.mrf.mxu0
        %v1364 = vadd.f32 0.0, %v1363
        %1365 = vmatmul.f32.gmra.mxu0 %v412
        %v1366 = vpop.f32.mrf.mxu0
        %v1367 = vadd.f32 0.0, %v1366
        %1368 = vmatmul.f32.gmra.mxu0 %v415
        %v1369 = vpop.f32.mrf.mxu0
        %v1370 = vadd.f32 0.0, %v1369
        %1371 = vmatmul.f32.gmra.mxu0 %v418
        %v1372 = vpop.f32.mrf.mxu0
        %v1373 = vadd.f32 0.0, %v1372
        %1374 = vmatmul.f32.gmra.mxu0 %v421
        %v1375 = vpop.f32.mrf.mxu0
        %v1376 = vadd.f32 0.0, %v1375
        %1377 = vmatmul.f32.gmra.mxu0 %v424
        %v1378 = vpop.f32.mrf.mxu0
        %v1379 = vadd.f32 0.0, %v1378
        %1380 = vmatmul.f32.gmra.mxu0 %v427
        %v1381 = vpop.f32.mrf.mxu0
        %v1382 = vadd.f32 0.0, %v1381
        %1383 = vmatmul.f32.gmra.mxu0 %v430
        %v1384 = vpop.f32.mrf.mxu0
        %v1385 = vadd.f32 0.0, %v1384
        %1386 = vmatmul.f32.gmra.mxu0 %v433
        %v1387 = vpop.f32.mrf.mxu0
        %v1388 = vadd.f32 0.0, %v1387
        %1389 = vdwg.mxu0
        %v1390 = vld [vmem:[%s5] sm:$0xff]
        %v1391 = vld [vmem:[%s5 + $0x8] sm:$0xff]
        %vm1392 = vcmask 64512
        %v1394 = vsel %vm1392, %v690, 0
        %v1397 = vsel %vm1392, %v705, 0
        %v1400 = vsel %vm1392, %v720, 0
        %v1403 = vsel %vm1392, %v735, 0
        %v1406 = vsel %vm1392, %v750, 0
        %v1409 = vsel %vm1392, %v765, 0
        %v1412 = vsel %vm1392, %v780, 0
        %v1415 = vsel %vm1392, %v795, 0
        %v1418 = vsel %vm1392, %v810, 0
        %v1421 = vsel %vm1392, %v825, 0
        %v1424 = vsel %vm1392, %v840, 0
        %v1427 = vsel %vm1392, %v855, 0
        %v1430 = vsel %vm1392, %v870, 0
        %v1433 = vsel %vm1392, %v885, 0
        %v1436 = vsel %vm1392, %v900, 0
        %v1439 = vsel %vm1392, %v915, 0
        %v1442 = vsel %vm1392, %v930, 0
        %v1445 = vsel %vm1392, %v945, 0
        %v1448 = vsel %vm1392, %v960, 0
        %v1451 = vsel %vm1392, %v975, 0
        %v1454 = vsel %vm1392, %v990, 0
        %v1457 = vsel %vm1392, %v1005, 0
        %v1460 = vsel %vm1392, %v1020, 0
        %v1463 = vsel %vm1392, %v1035, 0
        %v1466 = vsel %vm1392, %v1050, 0
        %v1469 = vsel %vm1392, %v1065, 0
        %v1472 = vsel %vm1392, %v1080, 0
        %v1475 = vsel %vm1392, %v1095, 0
        %v1478 = vsel %vm1392, %v1110, 0
        %v1481 = vsel %vm1392, %v1125, 0
        %v1484 = vsel %vm1392, %v1140, 0
        %v1487 = vsel %vm1392, %v1155, 0
        %1489 = vmatpush.msra.mxu0 0.0
        %1490 = vmatpush.msra.mxu0 0.0
        %1491 = vmatpush.msra.mxu0 0.0
        %1492 = vmatpush.msra.mxu0 0.0
        %1493 = vmatpush.msra.mxu0 0.0
        %1494 = vmatpush.msra.mxu0 0.0
        %1495 = vmatpush.msra.mxu0 0.0
        %1496 = vmatpush.msra.mxu0 0.0
        %1497 = vmatpush.msra.mxu0 0.0
        %1498 = vmatpush.msra.mxu0 0.0
        %1499 = vmatpush.msra.mxu0 0.0
        %1500 = vmatpush.msra.mxu0 0.0
        %1501 = vmatpush.msra.mxu0 0.0
        %1502 = vmatpush.msra.mxu0 0.0
        %1503 = vmatpush.msra.mxu0 0.0
        %1504 = vmatpush.msra.mxu0 %v1390
        %1505 = vmatmul.f32.gmra.mxu0 %v1394
        %v1506 = vpop.f32.mrf.mxu0
        %v1507 = vadd.f32 0.0, %v1506
        %1508 = vmatmul.f32.gmra.mxu0 %v1397
        %v1509 = vpop.f32.mrf.mxu0
        %v1510 = vadd.f32 0.0, %v1509
        %1511 = vmatmul.f32.gmra.mxu0 %v1400
        %v1512 = vpop.f32.mrf.mxu0
        %v1513 = vadd.f32 0.0, %v1512
        %1514 = vmatmul.f32.gmra.mxu0 %v1403
        %v1515 = vpop.f32.mrf.mxu0
        %v1516 = vadd.f32 0.0, %v1515
        %1517 = vmatmul.f32.gmra.mxu0 %v1406
        %v1518 = vpop.f32.mrf.mxu0
        %v1519 = vadd.f32 0.0, %v1518
        %1520 = vmatmul.f32.gmra.mxu0 %v1409
        %v1521 = vpop.f32.mrf.mxu0
        %v1522 = vadd.f32 0.0, %v1521
        %1523 = vmatmul.f32.gmra.mxu0 %v1412
        %v1524 = vpop.f32.mrf.mxu0
        %v1525 = vadd.f32 0.0, %v1524
        %1526 = vmatmul.f32.gmra.mxu0 %v1415
        %v1527 = vpop.f32.mrf.mxu0
        %v1528 = vadd.f32 0.0, %v1527
        %1529 = vmatmul.f32.gmra.mxu0 %v1418
        %v1530 = vpop.f32.mrf.mxu0
        %v1531 = vadd.f32 0.0, %v1530
        %1532 = vmatmul.f32.gmra.mxu0 %v1421
        %v1533 = vpop.f32.mrf.mxu0
        %v1534 = vadd.f32 0.0, %v1533
        %1535 = vmatmul.f32.gmra.mxu0 %v1424
        %v1536 = vpop.f32.mrf.mxu0
        %v1537 = vadd.f32 0.0, %v1536
        %1538 = vmatmul.f32.gmra.mxu0 %v1427
        %v1539 = vpop.f32.mrf.mxu0
        %v1540 = vadd.f32 0.0, %v1539
        %1541 = vmatmul.f32.gmra.mxu0 %v1430
        %v1542 = vpop.f32.mrf.mxu0
        %v1543 = vadd.f32 0.0, %v1542
        %1544 = vmatmul.f32.gmra.mxu0 %v1433
        %v1545 = vpop.f32.mrf.mxu0
        %v1546 = vadd.f32 0.0, %v1545
        %1547 = vmatmul.f32.gmra.mxu0 %v1436
        %v1548 = vpop.f32.mrf.mxu0
        %v1549 = vadd.f32 0.0, %v1548
        %1550 = vmatmul.f32.gmra.mxu0 %v1439
        %v1551 = vpop.f32.mrf.mxu0
        %v1552 = vadd.f32 0.0, %v1551
        %1553 = vmatmul.f32.gmra.mxu0 %v1442
        %v1554 = vpop.f32.mrf.mxu0
        %v1555 = vadd.f32 0.0, %v1554
        %1556 = vmatmul.f32.gmra.mxu0 %v1445
        %v1557 = vpop.f32.mrf.mxu0
        %v1558 = vadd.f32 0.0, %v1557
        %1559 = vmatmul.f32.gmra.mxu0 %v1448
        %v1560 = vpop.f32.mrf.mxu0
        %v1561 = vadd.f32 0.0, %v1560
        %1562 = vmatmul.f32.gmra.mxu0 %v1451
        %v1563 = vpop.f32.mrf.mxu0
        %v1564 = vadd.f32 0.0, %v1563
        %1565 = vmatmul.f32.gmra.mxu0 %v1454
        %v1566 = vpop.f32.mrf.mxu0
        %v1567 = vadd.f32 0.0, %v1566
        %1568 = vmatmul.f32.gmra.mxu0 %v1457
        %v1569 = vpop.f32.mrf.mxu0
        %v1570 = vadd.f32 0.0, %v1569
        %1571 = vmatmul.f32.gmra.mxu0 %v1460
        %v1572 = vpop.f32.mrf.mxu0
        %v1573 = vadd.f32 0.0, %v1572
        %1574 = vmatmul.f32.gmra.mxu0 %v1463
        %v1575 = vpop.f32.mrf.mxu0
        %v1576 = vadd.f32 0.0, %v1575
        %1577 = vmatmul.f32.gmra.mxu0 %v1466
        %v1578 = vpop.f32.mrf.mxu0
        %v1579 = vadd.f32 0.0, %v1578
        %1580 = vmatmul.f32.gmra.mxu0 %v1469
        %v1581 = vpop.f32.mrf.mxu0
        %v1582 = vadd.f32 0.0, %v1581
        %1583 = vmatmul.f32.gmra.mxu0 %v1472
        %v1584 = vpop.f32.mrf.mxu0
        %v1585 = vadd.f32 0.0, %v1584
        %1586 = vmatmul.f32.gmra.mxu0 %v1475
        %v1587 = vpop.f32.mrf.mxu0
        %v1588 = vadd.f32 0.0, %v1587
        %1589 = vmatmul.f32.gmra.mxu0 %v1478
        %v1590 = vpop.f32.mrf.mxu0
        %v1591 = vadd.f32 0.0, %v1590
        %1592 = vmatmul.f32.gmra.mxu0 %v1481
        %v1593 = vpop.f32.mrf.mxu0
        %v1594 = vadd.f32 0.0, %v1593
        %1595 = vmatmul.f32.gmra.mxu0 %v1484
        %v1596 = vpop.f32.mrf.mxu0
        %v1597 = vadd.f32 0.0, %v1596
        %1598 = vmatmul.f32.gmra.mxu0 %v1487
        %v1599 = vpop.f32.mrf.mxu0
        %v1600 = vadd.f32 0.0, %v1599
        %1601 = vdwg.mxu0
        %1602 = vmatpush.msra.mxu0 0.0
        %1603 = vmatpush.msra.mxu0 0.0
        %1604 = vmatpush.msra.mxu0 0.0
        %1605 = vmatpush.msra.mxu0 0.0
        %1606 = vmatpush.msra.mxu0 0.0
        %1607 = vmatpush.msra.mxu0 0.0
        %1608 = vmatpush.msra.mxu0 0.0
        %1609 = vmatpush.msra.mxu0 0.0
        %1610 = vmatpush.msra.mxu0 0.0
        %1611 = vmatpush.msra.mxu0 0.0
        %1612 = vmatpush.msra.mxu0 0.0
        %1613 = vmatpush.msra.mxu0 0.0
        %1614 = vmatpush.msra.mxu0 0.0
        %1615 = vmatpush.msra.mxu0 0.0
        %1616 = vmatpush.msra.mxu0 0.0
        %1617 = vmatpush.msra.mxu0 %v1391
        %1618 = vmatmul.f32.gmra.mxu0 %v1394
        %v1619 = vpop.f32.mrf.mxu0
        %v1620 = vadd.f32 0.0, %v1619
        %1621 = vmatmul.f32.gmra.mxu0 %v1397
        %v1622 = vpop.f32.mrf.mxu0
        %v1623 = vadd.f32 0.0, %v1622
        %1624 = vmatmul.f32.gmra.mxu0 %v1400
        %v1625 = vpop.f32.mrf.mxu0
        %v1626 = vadd.f32 0.0, %v1625
        %1627 = vmatmul.f32.gmra.mxu0 %v1403
        %v1628 = vpop.f32.mrf.mxu0
        %v1629 = vadd.f32 0.0, %v1628
        %1630 = vmatmul.f32.gmra.mxu0 %v1406
        %v1631 = vpop.f32.mrf.mxu0
        %v1632 = vadd.f32 0.0, %v1631
        %1633 = vmatmul.f32.gmra.mxu0 %v1409
        %v1634 = vpop.f32.mrf.mxu0
        %v1635 = vadd.f32 0.0, %v1634
        %1636 = vmatmul.f32.gmra.mxu0 %v1412
        %v1637 = vpop.f32.mrf.mxu0
        %v1638 = vadd.f32 0.0, %v1637
        %1639 = vmatmul.f32.gmra.mxu0 %v1415
        %v1640 = vpop.f32.mrf.mxu0
        %v1641 = vadd.f32 0.0, %v1640
        %1642 = vmatmul.f32.gmra.mxu0 %v1418
        %v1643 = vpop.f32.mrf.mxu0
        %v1644 = vadd.f32 0.0, %v1643
        %1645 = vmatmul.f32.gmra.mxu0 %v1421
        %v1646 = vpop.f32.mrf.mxu0
        %v1647 = vadd.f32 0.0, %v1646
        %1648 = vmatmul.f32.gmra.mxu0 %v1424
        %v1649 = vpop.f32.mrf.mxu0
        %v1650 = vadd.f32 0.0, %v1649
        %1651 = vmatmul.f32.gmra.mxu0 %v1427
        %v1652 = vpop.f32.mrf.mxu0
        %v1653 = vadd.f32 0.0, %v1652
        %1654 = vmatmul.f32.gmra.mxu0 %v1430
        %v1655 = vpop.f32.mrf.mxu0
        %v1656 = vadd.f32 0.0, %v1655
        %1657 = vmatmul.f32.gmra.mxu0 %v1433
        %v1658 = vpop.f32.mrf.mxu0
        %v1659 = vadd.f32 0.0, %v1658
        %1660 = vmatmul.f32.gmra.mxu0 %v1436
        %v1661 = vpop.f32.mrf.mxu0
        %v1662 = vadd.f32 0.0, %v1661
        %1663 = vmatmul.f32.gmra.mxu0 %v1439
        %v1664 = vpop.f32.mrf.mxu0
        %v1665 = vadd.f32 0.0, %v1664
        %1666 = vmatmul.f32.gmra.mxu0 %v1442
        %v1667 = vpop.f32.mrf.mxu0
        %v1668 = vadd.f32 0.0, %v1667
        %1669 = vmatmul.f32.gmra.mxu0 %v1445
        %v1670 = vpop.f32.mrf.mxu0
        %v1671 = vadd.f32 0.0, %v1670
        %1672 = vmatmul.f32.gmra.mxu0 %v1448
        %v1673 = vpop.f32.mrf.mxu0
        %v1674 = vadd.f32 0.0, %v1673
        %1675 = vmatmul.f32.gmra.mxu0 %v1451
        %v1676 = vpop.f32.mrf.mxu0
        %v1677 = vadd.f32 0.0, %v1676
        %1678 = vmatmul.f32.gmra.mxu0 %v1454
        %v1679 = vpop.f32.mrf.mxu0
        %v1680 = vadd.f32 0.0, %v1679
        %1681 = vmatmul.f32.gmra.mxu0 %v1457
        %v1682 = vpop.f32.mrf.mxu0
        %v1683 = vadd.f32 0.0, %v1682
        %1684 = vmatmul.f32.gmra.mxu0 %v1460
        %v1685 = vpop.f32.mrf.mxu0
        %v1686 = vadd.f32 0.0, %v1685
        %1687 = vmatmul.f32.gmra.mxu0 %v1463
        %v1688 = vpop.f32.mrf.mxu0
        %v1689 = vadd.f32 0.0, %v1688
        %1690 = vmatmul.f32.gmra.mxu0 %v1466
        %v1691 = vpop.f32.mrf.mxu0
        %v1692 = vadd.f32 0.0, %v1691
        %1693 = vmatmul.f32.gmra.mxu0 %v1469
        %v1694 = vpop.f32.mrf.mxu0
        %v1695 = vadd.f32 0.0, %v1694
        %1696 = vmatmul.f32.gmra.mxu0 %v1472
        %v1697 = vpop.f32.mrf.mxu0
        %v1698 = vadd.f32 0.0, %v1697
        %1699 = vmatmul.f32.gmra.mxu0 %v1475
        %v1700 = vpop.f32.mrf.mxu0
        %v1701 = vadd.f32 0.0, %v1700
        %1702 = vmatmul.f32.gmra.mxu0 %v1478
        %v1703 = vpop.f32.mrf.mxu0
        %v1704 = vadd.f32 0.0, %v1703
        %1705 = vmatmul.f32.gmra.mxu0 %v1481
        %v1706 = vpop.f32.mrf.mxu0
        %v1707 = vadd.f32 0.0, %v1706
        %1708 = vmatmul.f32.gmra.mxu0 %v1484
        %v1709 = vpop.f32.mrf.mxu0
        %v1710 = vadd.f32 0.0, %v1709
        %1711 = vmatmul.f32.gmra.mxu0 %v1487
        %v1712 = vpop.f32.mrf.mxu0
        %v1713 = vadd.f32 0.0, %v1712
        %1714 = vdwg.mxu0
        %v1715 = vmul.f32 %v1182, %v1507
        %v1716 = vmul.f32 %v1295, %v1620
        %v1717 = vmul.f32 %v1185, %v1510
        %v1718 = vmul.f32 %v1298, %v1623
        %v1719 = vmul.f32 %v1188, %v1513
        %v1720 = vmul.f32 %v1301, %v1626
        %v1721 = vmul.f32 %v1191, %v1516
        %v1722 = vmul.f32 %v1304, %v1629
        %v1723 = vmul.f32 %v1194, %v1519
        %v1724 = vmul.f32 %v1307, %v1632
        %v1725 = vmul.f32 %v1197, %v1522
        %v1726 = vmul.f32 %v1310, %v1635
        %v1727 = vmul.f32 %v1200, %v1525
        %v1728 = vmul.f32 %v1313, %v1638
        %v1729 = vmul.f32 %v1203, %v1528
        %v1730 = vmul.f32 %v1316, %v1641
        %v1731 = vmul.f32 %v1206, %v1531
        %v1732 = vmul.f32 %v1319, %v1644
        %v1733 = vmul.f32 %v1209, %v1534
        %v1734 = vmul.f32 %v1322, %v1647
        %v1735 = vmul.f32 %v1212, %v1537
        %v1736 = vmul.f32 %v1325, %v1650
        %v1737 = vmul.f32 %v1215, %v1540
        %v1738 = vmul.f32 %v1328, %v1653
        %v1739 = vmul.f32 %v1218, %v1543
        %v1740 = vmul.f32 %v1331, %v1656
        %v1741 = vmul.f32 %v1221, %v1546
        %v1742 = vmul.f32 %v1334, %v1659
        %v1743 = vmul.f32 %v1224, %v1549
        %v1744 = vmul.f32 %v1337, %v1662
        %v1745 = vmul.f32 %v1227, %v1552
        %v1746 = vmul.f32 %v1340, %v1665
        %v1747 = vmul.f32 %v1230, %v1555
        %v1748 = vmul.f32 %v1343, %v1668
        %v1749 = vmul.f32 %v1233, %v1558
        %v1750 = vmul.f32 %v1346, %v1671
        %v1751 = vmul.f32 %v1236, %v1561
        %v1752 = vmul.f32 %v1349, %v1674
        %v1753 = vmul.f32 %v1239, %v1564
        %v1754 = vmul.f32 %v1352, %v1677
        %v1755 = vmul.f32 %v1242, %v1567
        %v1756 = vmul.f32 %v1355, %v1680
        %v1757 = vmul.f32 %v1245, %v1570
        %v1758 = vmul.f32 %v1358, %v1683
        %v1759 = vmul.f32 %v1248, %v1573
        %v1760 = vmul.f32 %v1361, %v1686
        %v1761 = vmul.f32 %v1251, %v1576
        %v1762 = vmul.f32 %v1364, %v1689
        %v1763 = vmul.f32 %v1254, %v1579
        %v1764 = vmul.f32 %v1367, %v1692
        %v1765 = vmul.f32 %v1257, %v1582
        %v1766 = vmul.f32 %v1370, %v1695
        %v1767 = vmul.f32 %v1260, %v1585
        %v1768 = vmul.f32 %v1373, %v1698
        %v1769 = vmul.f32 %v1263, %v1588
        %v1770 = vmul.f32 %v1376, %v1701
        %v1771 = vmul.f32 %v1266, %v1591
        %v1772 = vmul.f32 %v1379, %v1704
        %v1773 = vmul.f32 %v1269, %v1594
        %v1774 = vmul.f32 %v1382, %v1707
        %v1775 = vmul.f32 %v1272, %v1597
        %v1776 = vmul.f32 %v1385, %v1710
        %v1777 = vmul.f32 %v1275, %v1600
        %v1778 = vmul.f32 %v1388, %v1713
        %v1779 = vld [vmem:[%s296] sm:$0x3]
        %v1781 = vperm.slane %v1779, 0
        %v1782 = vperm.slane %v1779, 1
        %v1785 = vmul.f32 %v1715, %v1781
        %v1786 = vmul.f32 %v1716, %v1782
        %v1787 = vmul.f32 %v1717, %v1781
        %v1788 = vmul.f32 %v1718, %v1782
        %v1789 = vmul.f32 %v1719, %v1781
        %v1790 = vmul.f32 %v1720, %v1782
        %v1791 = vmul.f32 %v1721, %v1781
        %v1792 = vmul.f32 %v1722, %v1782
        %v1793 = vmul.f32 %v1723, %v1781
        %v1794 = vmul.f32 %v1724, %v1782
        %v1795 = vmul.f32 %v1725, %v1781
        %v1796 = vmul.f32 %v1726, %v1782
        %v1797 = vmul.f32 %v1727, %v1781
        %v1798 = vmul.f32 %v1728, %v1782
        %v1799 = vmul.f32 %v1729, %v1781
        %v1800 = vmul.f32 %v1730, %v1782
        %v1801 = vmul.f32 %v1731, %v1781
        %v1802 = vmul.f32 %v1732, %v1782
        %v1803 = vmul.f32 %v1733, %v1781
        %v1804 = vmul.f32 %v1734, %v1782
        %v1805 = vmul.f32 %v1735, %v1781
        %v1806 = vmul.f32 %v1736, %v1782
        %v1807 = vmul.f32 %v1737, %v1781
        %v1808 = vmul.f32 %v1738, %v1782
        %v1809 = vmul.f32 %v1739, %v1781
        %v1810 = vmul.f32 %v1740, %v1782
        %v1811 = vmul.f32 %v1741, %v1781
        %v1812 = vmul.f32 %v1742, %v1782
        %v1813 = vmul.f32 %v1743, %v1781
        %v1814 = vmul.f32 %v1744, %v1782
        %v1815 = vmul.f32 %v1745, %v1781
        %v1816 = vmul.f32 %v1746, %v1782
        %v1817 = vmul.f32 %v1747, %v1781
        %v1818 = vmul.f32 %v1748, %v1782
        %v1819 = vmul.f32 %v1749, %v1781
        %v1820 = vmul.f32 %v1750, %v1782
        %v1821 = vmul.f32 %v1751, %v1781
        %v1822 = vmul.f32 %v1752, %v1782
        %v1823 = vmul.f32 %v1753, %v1781
        %v1824 = vmul.f32 %v1754, %v1782
        %v1825 = vmul.f32 %v1755, %v1781
        %v1826 = vmul.f32 %v1756, %v1782
        %v1827 = vmul.f32 %v1757, %v1781
        %v1828 = vmul.f32 %v1758, %v1782
        %v1829 = vmul.f32 %v1759, %v1781
        %v1830 = vmul.f32 %v1760, %v1782
        %v1831 = vmul.f32 %v1761, %v1781
        %v1832 = vmul.f32 %v1762, %v1782
        %v1833 = vmul.f32 %v1763, %v1781
        %v1834 = vmul.f32 %v1764, %v1782
        %v1835 = vmul.f32 %v1765, %v1781
        %v1836 = vmul.f32 %v1766, %v1782
        %v1837 = vmul.f32 %v1767, %v1781
        %v1838 = vmul.f32 %v1768, %v1782
        %v1839 = vmul.f32 %v1769, %v1781
        %v1840 = vmul.f32 %v1770, %v1782
        %v1841 = vmul.f32 %v1771, %v1781
        %v1842 = vmul.f32 %v1772, %v1782
        %v1843 = vmul.f32 %v1773, %v1781
        %v1844 = vmul.f32 %v1774, %v1782
        %v1845 = vmul.f32 %v1775, %v1781
        %v1846 = vmul.f32 %v1776, %v1782
        %v1847 = vmul.f32 %v1777, %v1781
        %v1848 = vmul.f32 %v1778, %v1782
        %1849 = vst [vmem:[%s282] sm:$0xff] %v1785
        %1850 = vst [vmem:[%s282 + $0x8] sm:$0xff] %v1786
        %1851 = vst [vmem:[%s282 + $0x10] sm:$0xff] %v1787
        %1852 = vst [vmem:[%s282 + $0x18] sm:$0xff] %v1788
        %1853 = vst [vmem:[%s282 + $0x20] sm:$0xff] %v1789
        %1854 = vst [vmem:[%s282 + $0x28] sm:$0xff] %v1790
        %1855 = vst [vmem:[%s282 + $0x30] sm:$0xff] %v1791
        %1856 = vst [vmem:[%s282 + $0x38] sm:$0xff] %v1792
        %1857 = vst [vmem:[%s282 + $0x40] sm:$0xff] %v1793
        %1858 = vst [vmem:[%s282 + $0x48] sm:$0xff] %v1794
        %1859 = vst [vmem:[%s282 + $0x50] sm:$0xff] %v1795
        %1860 = vst [vmem:[%s282 + $0x58] sm:$0xff] %v1796
        %1861 = vst [vmem:[%s282 + $0x60] sm:$0xff] %v1797
        %1862 = vst [vmem:[%s282 + $0x68] sm:$0xff] %v1798
        %1863 = vst [vmem:[%s282 + $0x70] sm:$0xff] %v1799
        %1864 = vst [vmem:[%s282 + $0x78] sm:$0xff] %v1800
        %1865 = vst [vmem:[%s282 + $0x80] sm:$0xff] %v1801
        %1866 = vst [vmem:[%s282 + $0x88] sm:$0xff] %v1802
        %1867 = vst [vmem:[%s282 + $0x90] sm:$0xff] %v1803
        %1868 = vst [vmem:[%s282 + $0x98] sm:$0xff] %v1804
        %1869 = vst [vmem:[%s282 + $0xa0] sm:$0xff] %v1805
        %1870 = vst [vmem:[%s282 + $0xa8] sm:$0xff] %v1806
        %1871 = vst [vmem:[%s282 + $0xb0] sm:$0xff] %v1807
        %1872 = vst [vmem:[%s282 + $0xb8] sm:$0xff] %v1808
        %1873 = vst [vmem:[%s282 + $0xc0] sm:$0xff] %v1809
        %1874 = vst [vmem:[%s282 + $0xc8] sm:$0xff] %v1810
        %1875 = vst [vmem:[%s282 + $0xd0] sm:$0xff] %v1811
        %1876 = vst [vmem:[%s282 + $0xd8] sm:$0xff] %v1812
        %1877 = vst [vmem:[%s282 + $0xe0] sm:$0xff] %v1813
        %1878 = vst [vmem:[%s282 + $0xe8] sm:$0xff] %v1814
        %1879 = vst [vmem:[%s282 + $0xf0] sm:$0xff] %v1815
        %1880 = vst [vmem:[%s282 + $0xf8] sm:$0xff] %v1816
        %1881 = vst [vmem:[%s282 + $0x100] sm:$0xff] %v1817
        %1882 = vst [vmem:[%s282 + $0x108] sm:$0xff] %v1818
        %1883 = vst [vmem:[%s282 + $0x110] sm:$0xff] %v1819
        %1884 = vst [vmem:[%s282 + $0x118] sm:$0xff] %v1820
        %1885 = vst [vmem:[%s282 + $0x120] sm:$0xff] %v1821
        %1886 = vst [vmem:[%s282 + $0x128] sm:$0xff] %v1822
        %1887 = vst [vmem:[%s282 + $0x130] sm:$0xff] %v1823
        %1888 = vst [vmem:[%s282 + $0x138] sm:$0xff] %v1824
        %1889 = vst [vmem:[%s282 + $0x140] sm:$0xff] %v1825
        %1890 = vst [vmem:[%s282 + $0x148] sm:$0xff] %v1826
        %1891 = vst [vmem:[%s282 + $0x150] sm:$0xff] %v1827
        %1892 = vst [vmem:[%s282 + $0x158] sm:$0xff] %v1828
        %1893 = vst [vmem:[%s282 + $0x160] sm:$0xff] %v1829
        %1894 = vst [vmem:[%s282 + $0x168] sm:$0xff] %v1830
        %1895 = vst [vmem:[%s282 + $0x170] sm:$0xff] %v1831
        %1896 = vst [vmem:[%s282 + $0x178] sm:$0xff] %v1832
        %1897 = vst [vmem:[%s282 + $0x180] sm:$0xff] %v1833
        %1898 = vst [vmem:[%s282 + $0x188] sm:$0xff] %v1834
        %1899 = vst [vmem:[%s282 + $0x190] sm:$0xff] %v1835
        %1900 = vst [vmem:[%s282 + $0x198] sm:$0xff] %v1836
        %1901 = vst [vmem:[%s282 + $0x1a0] sm:$0xff] %v1837
        %1902 = vst [vmem:[%s282 + $0x1a8] sm:$0xff] %v1838
        %1903 = vst [vmem:[%s282 + $0x1b0] sm:$0xff] %v1839
        %1904 = vst [vmem:[%s282 + $0x1b8] sm:$0xff] %v1840
        %1905 = vst [vmem:[%s282 + $0x1c0] sm:$0xff] %v1841
        %1906 = vst [vmem:[%s282 + $0x1c8] sm:$0xff] %v1842
        %1907 = vst [vmem:[%s282 + $0x1d0] sm:$0xff] %v1843
        %1908 = vst [vmem:[%s282 + $0x1d8] sm:$0xff] %v1844
        %1909 = vst [vmem:[%s282 + $0x1e0] sm:$0xff] %v1845
        %1910 = vst [vmem:[%s282 + $0x1e8] sm:$0xff] %v1846
        %1911 = vst [vmem:[%s282 + $0x1f0] sm:$0xff] %v1847
        %1912 = vst [vmem:[%s282 + $0x1f8] sm:$0xff] %v1848
        %s1913 = sand.u32 %s180, 1
        %s1914 = scalar_lea.sflag [#allocation3], %s1913
        %s1915 = sand.u32 %s180, 1
        %s1916 = smul.addr %s1915, 512
        %s1917 = scalar_lea.vmem [#allocation2], %s1916
        // Predicated region
        $region45: #{tpu_custom_call.1} parent=43 // pred_check
          %p1918 = pneg %p190
        $region46: #{tpu_custom_call.1} parent=43 // pred_check_branch
          %1920 = sbr.rel (%p1918) target = $region48
        $region47: #{tpu_custom_call.1} parent=43 // pred_region
          %s1921 = smul.u32 32, %s25
          %1923 = vsyncadd %s1914, 0
          %s1924 = smul.addr %s1921, 2
          %s1925 = smul.addr %s24, 64
          %s1926 = sadd.s32 %s1924, %s1925
          %s1927 = smul.addr %s1926, 8
          %s1928 = scalar_lea.hbm %s6, %s1927
          %s1929 = sshll.u32 %s1917, 4
          %s1930 = int_to_ptr.vmem [resolvable:$true] %s1929
          %s1931 = sshll.u32 %s1928, 4
          %s1932 = int_to_ptr.hbm [resolvable:$true] %s1931
          %1937 = dma.vmem_to_hbm [thread:$0]  %s1930, 8192, %s1932, %s1914, 256, 256, 16
        $region48: #{tpu_custom_call.1} parent=43 // pred_fallthru
          _
      $region44: #{tpu_custom_call.1} parent=5 // pred_fallthru
        _
      %p1938 = scmp.le.s32.totalorder 2, %s15
      // Predicated region
      $region49: #{tpu_custom_call.1} parent=5 // pred_check
        %p1939 = pneg %p1938
      $region50: #{tpu_custom_call.1} parent=5 // pred_check_branch
        %1941 = sbr.rel (%p1939) target = $region52
      $region51: #{tpu_custom_call.1} parent=5 // pred_region
        %s1942 = ssub.s32 %s15, 2
        // Predicated region
        $region53: #{tpu_custom_call.1} parent=51 // pred_check
          %p1943 = pneg %p196
        $region54: #{tpu_custom_call.1} parent=51 // pred_check_branch
          %1945 = sbr.rel (%p1943) target = $region56
        $region55: #{tpu_custom_call.1} parent=51 // pred_region
          %s1946 = sand.u32 %s181, 1
          %s1947 = scalar_lea.sflag [#allocation3], %s1946
          %s1948 = sand.u32 %s181, 1
          %s1949 = smul.addr %s1948, 512
          %s1950 = scalar_lea.vmem [#allocation2], %s1949
          %1952 = dma.done %s1947, 8192
        $region56: #{tpu_custom_call.1} parent=51 // pred_fallthru
          _
      $region52: #{tpu_custom_call.1} parent=5 // pred_fallthru
        _
    $region6: #{tpu_custom_call.1} parent=1 // loop_footer
      %s19 = sadd.s32 1, %s15
    $region7: #{tpu_custom_call.1} parent=1 // loop_footer_branch
      %14 = sbr.rel target = $region3
    $region8: #{tpu_custom_call.1} parent=1 // loop_exit
      _
    %1953 = vsyncpa [#allocation3], 1
    %s1954 = scalar_lea.sflag [#allocation3], 1
    %1955 = vsyncpa %s1954, 1

</llo_original>
